<compile_context>
chip_gen: v7x
topology: tpu7x:2x2x1
jax: 0.10.0
libtpu: 0.0.40
codegen_flags: <defaults>
</compile_context>

<pallas_src>
import math
import functools

import jax
import jax.numpy as jnp
from jax.experimental import pallas as pl
from jax.experimental.pallas import tpu as pltpu


# --------------------------------------------------------------------------- #
# Kernel 1: GroupNorm-apply + de-interleaved Q/K/V 1x1 projections
# --------------------------------------------------------------------------- #
def qkv_proj_kernel(x_ref, ss_ref, wq_ref, wk_ref, wv_ref, bqkv_ref,
                    q_ref, k_ref, v_ref):
    """One (batch, T-tile) step.

    Ref shapes (batch dim squeezed by the BlockSpecs):
      x_ref : [C, Tt] input dtype        ss_ref  : [C, 2] f32 (scale, shift)
      w*_ref: [C, C] bf16 (resident)     bqkv_ref: [C, 3] f32 (b_q, b_k, b_v)
      q/k/v_ref: [C, Tt] bf16 outputs
    """
    ss = ss_ref[...]
    xn = (x_ref[...].astype(jnp.float32) * ss[:, 0:1] + ss[:, 1:2]
          ).astype(jnp.bfloat16)                                     # [C, Tt]
    b = bqkv_ref[...]
    # Three bf16 MXU matmuls with f32 accumulation, bias-added and cast straight
    # into the outputs -- no [3C, T] f32 temp, no head reshuffle in VMEM.
    q = jnp.dot(wq_ref[...], xn, preferred_element_type=jnp.float32) + b[:, 0:1]
    k = jnp.dot(wk_ref[...], xn, preferred_element_type=jnp.float32) + b[:, 1:2]
    v = jnp.dot(wv_ref[...], xn, preferred_element_type=jnp.float32) + b[:, 2:3]
    q_ref[...] = q.astype(jnp.bfloat16)
    k_ref[...] = k.astype(jnp.bfloat16)
    v_ref[...] = v.astype(jnp.bfloat16)


# --------------------------------------------------------------------------- #
# Kernel 2: flash attention over resident K/V + proj_out + residual
# --------------------------------------------------------------------------- #
def attn_proj_kernel(q_ref, k_ref, v_ref, x_ref, wproj_ref, bproj_ref, o_ref,
                     a_scr, *, num_heads, kv_chunk, kv_unroll, exp_in_bf16):
    """One (batch, query-tile) step.

    Ref shapes (batch dim squeezed):
      q_ref : [C, Tq] bf16 (attention scale already folded into the weights)
      k_ref, v_ref: [C, T] bf16 (resident for the whole batch element)
      x_ref : [C, Tq] input dtype (residual)
      wproj_ref: [C, C] bf16     bproj_ref: [C, 1] f32
      o_ref : [C, Tq] out dtype
      a_scr : [Tq, C] bf16 VMEM scratch (normalized attention output, head-major)
    """
    C, t_q = q_ref.shape
    T = k_ref.shape[-1]
    ch = C // num_heads
    num_kv = T // kv_chunk

    for h in range(num_heads):                        # static; heads stay flat on C
        hoff = h * ch
        # One small XLU transpose per head (reused for every kv chunk) so the
        # score matmul is a plain NN dot and the PV matmul a plain NT dot.
        q_h = q_ref[pl.ds(hoff, ch), :].T             # [Tq, ch] bf16

        def kv_step(j, carry):
            m, l, acc = carry                         # [Tq,1], [Tq,1], [Tq,ch] f32
            start = pl.multiple_of(j * kv_chunk, kv_chunk)
            k_hj = k_ref[pl.ds(hoff, ch), pl.ds(start, kv_chunk)]    # [ch, kv]
            v_hj = v_ref[pl.ds(hoff, ch), pl.ds(start, kv_chunk)]    # [ch, kv]
            s = jnp.dot(q_h, k_hj, preferred_element_type=jnp.float32)  # [Tq, kv]
            m_new = jnp.maximum(m, jnp.max(s, axis=1, keepdims=True))
            z = s - m_new
            # bf16 exp halves EUP work on v6e/v7x (the saturating unit of this
            # loop); default f32 keeps the result bit-closer to the reference
            # and is the right choice on v5e (MXU-bound, no bf16 EUP).
            p = jnp.exp(z.astype(jnp.bfloat16) if exp_in_bf16 else z)
            alpha = jnp.exp(m - m_new)                               # [Tq, 1]
            l_new = alpha * l + jnp.sum(p, axis=1, keepdims=True,
                                        dtype=jnp.float32)
            pv = jax.lax.dot_general(                                # [Tq, ch]
                p.astype(jnp.bfloat16), v_hj,
                (((1,), (1,)), ((), ())),             # NT: contract the kv axis
                preferred_element_type=jnp.float32)
            return m_new, l_new, alpha * acc + pv

        m0 = jnp.full((t_q, 1), -jnp.inf, jnp.float32)
        l0 = jnp.zeros((t_q, 1), jnp.float32)
        acc0 = jnp.zeros((t_q, ch), jnp.float32)
        # Per-head carries are only O(ch*Tq) (no big [nh,ch,T] accumulator), and
        # the loop is unrolled so the next chunk's QK^T overlaps this chunk's exp.
        _, l, acc = jax.lax.fori_loop(0, num_kv, kv_step, (m0, l0, acc0),
                                      unroll=kv_unroll)
        inv_l = pl.reciprocal(l, approx=True)         # EUP slot, off the VALU
        a_scr[:, pl.ds(hoff, ch)] = (acc * inv_l).astype(jnp.bfloat16)

    # proj_out: 1x1 Conv1d (zero_module-initialized in the real model).
    # NT dot keeps `a` in its [Tq, C] layout; output is lane-dense [C, Tq].
    h_out = jax.lax.dot_general(wproj_ref[...], a_scr[...],
                                (((1,), (1,)), ((), ())),
                                preferred_element_type=jnp.float32)  # [C, Tq]
    h_out = h_out + bproj_ref[...]
    o_ref[...] = (x_ref[...].astype(jnp.float32) + h_out).astype(o_ref.dtype)


# --------------------------------------------------------------------------- #
# Tiling / VMEM helpers
# --------------------------------------------------------------------------- #
def _vmem_cap_bytes():
    try:
        info = pltpu.get_tpu_info()
        cap = getattr(info, "vmem_capacity_bytes", None)
        if cap:
            return int(cap)
    except Exception:
        pass
    return 64 * 2 ** 20      # conservative fallback: v7x per-TensorCore VMEM


def _pick_tile(total, target):
    """Largest multiple-of-128 divisor of `total` that is <= target, else `total`."""
    if total <= target:
        return total
    best = None
    for d in range(128, target + 1, 128):
        if total % d == 0:
            best = d
    return best if best is not None else total


def _pick_kv_chunk(T, t_q, vmem_cap):
    # Live per-kv-step score tiles: s(f32) + p(f32) + p(bf16) ~= 10 B/elem on a
    # [kv, Tq] tile.  Budget ~vmem_cap/16: ~4 MiB on v7x, ~8 MiB on v5e/v6e.
    budget = max(1 << 20, min(8 << 20, vmem_cap // 16))
    cap = max(128, budget // (10 * t_q))
    return _pick_tile(T, min(cap, T))


def _vmem_estimate_qkv(C, t_t):
    f32, b16 = 4, 2
    return (2 * C * t_t * f32                 # x tile (double-buffered)
            + 3 * 2 * C * t_t * b16           # q/k/v output tiles
            + 2 * 3 * C * C * b16             # w_q/w_k/w_v (constant index, 2 bufs)
            + 4 * C * 128 * f32               # lane-padded ss + bqkv blocks
            + C * t_t * (b16 + 3 * f32))      # xn + three f32 matmul results


def _vmem_estimate_attn(C, T, t_q, kv, ch):
    f32, b16 = 4, 2
    return (2 * C * t_q * b16                 # q tile
            + 2 * 2 * C * T * b16             # K / V resident per batch element
            + 2 * C * t_q * f32               # x tile (residual)
            + 2 * C * t_q * f32               # out tile
            + 2 * C * C * b16                 # w_proj
            + 2 * C * 128 * f32               # b_proj (lane padded)
            + C * t_q * b16                   # a_scr
            + kv * t_q * (2 * f32 + b16)      # s, p, p(bf16)
            + 2 * ch * t_q * f32 + 8 * t_q * f32)   # acc / pv / m / l / alpha


# --------------------------------------------------------------------------- #
# Host wrapper
# --------------------------------------------------------------------------- #
def attention_block(x, params, *, num_heads=8, num_groups=32, eps=1e-5,
                    q_tile=None, kv_chunk=None, proj_tile=None,
                    exp_in_bf16=False):
    B, C, H, W = x.shape
    assert C % num_groups == 0 and C % num_heads == 0
    T = H * W
    ch = C // num_heads

    vmem_cap = _vmem_cap_bytes()
    vmem_ceiling = int(0.8 * vmem_cap)        # headroom for compiler scratch

    t_q = q_tile if q_tile is not None else _pick_tile(T, 512)
    t_t = proj_tile if proj_tile is not None else _pick_tile(T, 512)
    kv = kv_chunk if kv_chunk is not None else _pick_kv_chunk(T, t_q, vmem_cap)
    assert T % t_q == 0 and T % t_t == 0 and T % kv == 0
    assert t_q % 128 == 0 or t_q == T
    assert t_t % 128 == 0 or t_t == T
    assert kv % 128 == 0 or kv == T
    num_kv = T // kv
    kv_unroll = max(1, min(num_kv, 8))

    est1 = _vmem_estimate_qkv(C, t_t)
    est2 = _vmem_estimate_attn(C, T, t_q, kv, ch)
    # TODO(synk): for very large C*T, add a kv grid axis so K/V are not full-T
    #             resident (the only term here that tile shrinking cannot fix).
    if max(est1, est2) > vmem_ceiling:
        raise ValueError(
            f"AttentionBlock working set (~{max(est1, est2) / 2**20:.1f} MiB) "
            f"exceeds the {vmem_ceiling / 2**20:.1f} MiB VMEM budget; reduce "
            "q_tile / kv_chunk or tile K/V over a third grid axis.")

    x3 = x.reshape(B, C, T)

    # ---- GroupNorm(32, C) statistics: exact two-pass mean/var in plain JAX.
    # Feeding per-(b,c) scale/shift lets both kernels tile freely over T.
    xf = x3.astype(jnp.float32)
    cs = C // num_groups
    xg = xf.reshape(B, num_groups, cs * T)
    mean = jnp.mean(xg, axis=-1)                                   # [B, G]
    var = jnp.mean(jnp.square(xg - mean[..., None]), axis=-1)      # [B, G]
    rstd = jax.lax.rsqrt(var + eps)
    mean_c = jnp.repeat(mean, cs, axis=1)                          # [B, C]
    rstd_c = jnp.repeat(rstd, cs, axis=1)
    gamma = params['gamma'].astype(jnp.float32)[None, :]
    beta = params['beta'].astype(jnp.float32)[None, :]
    scale_bc = rstd_c * gamma
    shift_bc = beta - mean_c * scale_bc
    ss = jnp.stack([scale_bc, shift_bc], axis=-1)                  # [B, C, 2]

    # ---- de-interleave the legacy-head-order qkv conv into per-head-contiguous
    # w_q / w_k / w_v and fold the 1/sqrt(ch) attention scale into w_q / b_q.
    w_qkv = params['w_qkv'].reshape(num_heads, 3, ch, C).astype(jnp.float32)
    b_qkv = params['b_qkv'].reshape(num_heads, 3, ch).astype(jnp.float32)
    attn_scale = 1.0 / math.sqrt(ch)
    w_q = (w_qkv[:, 0] * attn_scale).reshape(C, C).astype(jnp.bfloat16)
    w_k = w_qkv[:, 1].reshape(C, C).astype(jnp.bfloat16)
    w_v = w_qkv[:, 2].reshape(C, C).astype(jnp.bfloat16)
    b_q = (b_qkv[:, 0] * attn_scale).reshape(C)
    b_k = b_qkv[:, 1].reshape(C)
    b_v = b_qkv[:, 2].reshape(C)
    bqkv = jnp.stack([b_q, b_k, b_v], axis=-1)                     # [C, 3] f32
    w_proj = params['w_proj'].reshape(C, C).astype(jnp.bfloat16)
    b_proj = params['b_proj'].reshape(C, 1).astype(jnp.float32)

    # ---------------- call 1: GroupNorm-apply + split QKV projection ----------
    n_t = T // t_t
    cost1 = pl.CostEstimate(
        flops=int(2 * 3 * C * C * T * B),
        transcendentals=0,
        bytes_accessed=int(B * C * T * (4 + 3 * 2) + 3 * C * C * 2))
    q_hbm, k_hbm, v_hbm = pl.pallas_call(
        qkv_proj_kernel,
        out_shape=(jax.ShapeDtypeStruct((B, C, T), jnp.bfloat16),) * 3,
        grid=(B, n_t),
        in_specs=[
            pl.BlockSpec((None, C, t_t), lambda b, t: (b, 0, t)),   # x tile
            pl.BlockSpec((None, C, 2), lambda b, t: (b, 0, 0)),     # GN scale/shift
            pl.BlockSpec((C, C), lambda b, t: (0, 0)),              # w_q (resident)
            pl.BlockSpec((C, C), lambda b, t: (0, 0)),              # w_k
            pl.BlockSpec((C, C), lambda b, t: (0, 0)),              # w_v
            pl.BlockSpec((C, 3), lambda b, t: (0, 0)),              # b_q|b_k|b_v
        ],
        out_specs=tuple(pl.BlockSpec((None, C, t_t), lambda b, t: (b, 0, t))
                        for _ in range(3)),
        compiler_params=pltpu.CompilerParams(
            dimension_semantics=("parallel", "parallel"),
            vmem_limit_bytes=min(vmem_ceiling, max(32 << 20, int(1.5 * est1)))),
        cost_estimate=cost1,
    )(x3, ss, w_q, w_k, w_v, bqkv)

    # ---------------- call 2: flash attention + proj_out + residual -----------
    n_q = T // t_q
    kernel2 = functools.partial(attn_proj_kernel, num_heads=num_heads,
                                kv_chunk=kv, kv_unroll=kv_unroll,
                                exp_in_bf16=exp_in_bf16)
    cost2 = pl.CostEstimate(
        flops=int(2 * 2 * C * T * T * B + 2 * C * C * T * B),
        transcendentals=int(B * num_heads * T * T),
        bytes_accessed=int(B * C * T * (3 * 2 + 4 + 4) + C * C * 2))
    out = pl.pallas_call(
        kernel2,
        out_shape=jax.ShapeDtypeStruct((B, C, T), x.dtype),
        grid=(B, n_q),
        in_specs=[
            pl.BlockSpec((None, C, t_q), lambda b, qi: (b, 0, qi)),  # Q tile
            pl.BlockSpec((None, C, T), lambda b, qi: (b, 0, 0)),     # K (per-batch)
            pl.BlockSpec((None, C, T), lambda b, qi: (b, 0, 0)),     # V (per-batch)
            pl.BlockSpec((None, C, t_q), lambda b, qi: (b, 0, qi)),  # x (residual)
            pl.BlockSpec((C, C), lambda b, qi: (0, 0)),              # w_proj
            pl.BlockSpec((C, 1), lambda b, qi: (0, 0)),              # b_proj
        ],
        out_specs=pl.BlockSpec((None, C, t_q), lambda b, qi: (b, 0, qi)),
        scratch_shapes=[pltpu.VMEM((t_q, C), jnp.bfloat16)],         # attn output
        compiler_params=pltpu.CompilerParams(
            dimension_semantics=("parallel", "parallel"),
            vmem_limit_bytes=min(vmem_ceiling, max(32 << 20, int(1.5 * est2)))),
        cost_estimate=cost2,
    )(q_hbm, k_hbm, v_hbm, x3, w_proj, b_proj)

    return out.reshape(B, C, H, W)


# --------------------------------------------------------------------------- #
# Params + pure-JAX reference
# --------------------------------------------------------------------------- #
def make_params(key, channels, *, zero_proj=False):
    """Parameter shapes matching AttentionBlock.__init__.

    norm: GroupNorm(32, C) weight/bias              -> [C], [C]
    qkv:  Conv1d(C, 3C, 1) weight/bias              -> [3C, C] (k=1 squeezed), [3C]
    proj: Conv1d(C, C, 1) (zero_module'd in model)  -> [C, C], [C]

    zero_proj=True reproduces zero_module exactly; default uses small random proj
    weights so the numerical check actually exercises the attention path.
    """
    k1, k2, k3, k4, k5, k6 = jax.random.split(key, 6)
    C = channels
    gamma = 1.0 + 0.1 * jax.random.normal(k1, (C,), jnp.float32)
    beta = 0.1 * jax.random.normal(k2, (C,), jnp.float32)
    w_qkv = 0.05 * jax.random.normal(k3, (3 * C, C), jnp.float32)
    b_qkv = 0.05 * jax.random.normal(k4, (3 * C,), jnp.float32)
    if zero_proj:
        w_proj = jnp.zeros((C, C), jnp.float32)
        b_proj = jnp.zeros((C,), jnp.float32)
    else:
        w_proj = 0.05 * jax.random.normal(k5, (C, C), jnp.float32)
        b_proj = 0.05 * jax.random.normal(k6, (C,), jnp.float32)
    return dict(gamma=gamma, beta=beta, w_qkv=w_qkv, b_qkv=b_qkv,
                w_proj=w_proj, b_proj=b_proj)


def reference(x, params, *, num_heads=8, num_groups=32, eps=1e-5):
    """Pure-JAX f32 reference mirroring the PyTorch forward."""
    B, C, H, W = x.shape
    T = H * W
    xf = x.reshape(B, C, T).astype(jnp.float32)
    xg = xf.reshape(B, num_groups, C // num_groups, T)
    mean = jnp.mean(xg, axis=(2, 3), keepdims=True)
    var = jnp.mean((xg - mean) ** 2, axis=(2, 3), keepdims=True)
    xn = ((xg - mean) / jnp.sqrt(var + eps)).reshape(B, C, T)
    xn = xn * params['gamma'].reshape(1, C, 1) + params['beta'].reshape(1, C, 1)
    qkv = jnp.einsum('oc,bct->bot', params['w_qkv'], xn) \
        + params['b_qkv'].reshape(1, 3 * C, 1)
    ch = C // num_heads
    scale = 1.0 / math.sqrt(math.sqrt(ch))
    qkv = qkv.reshape(B * num_heads, 3 * ch, T)
    q, k, v = qkv[:, :ch], qkv[:, ch:2 * ch], qkv[:, 2 * ch:]
    w = jnp.einsum('bct,bcs->bts', q * scale, k * scale)
    w = jax.nn.softmax(w, axis=-1)
    a = jnp.einsum('bts,bcs->bct', w, v).reshape(B, C, T)
    h = jnp.einsum('oc,bct->bot', params['w_proj'], a) \
        + params['b_proj'].reshape(1, C, 1)
    return (xf + h).reshape(B, C, H, W).astype(x.dtype)


if __name__ == "__main__":
    key = jax.random.PRNGKey(0)
    kx, kp = jax.random.split(key)

    # C divisible by 32 (GroupNorm) and by num_heads; head_dim = 16 keeps per-head
    # slices aligned to the bf16 sublane tile.
    B, C, H, W = 2, 128, 16, 16          # T = 256
    num_heads = 8

    x = jax.random.normal(kx, (B, C, H, W), jnp.float32)
    params = make_params(kp, C)          # non-zero proj so the check is meaningful

    # q_tile=128 -> two query tiles, kv_chunk=128 -> two online-softmax steps:
    # exercises both tiling paths at this small T.
    out = attention_block(x, params, num_heads=num_heads, q_tile=128, kv_chunk=128)
    out = jax.block_until_ready(out)

    ref = reference(x, params, num_heads=num_heads)
    assert out.shape == (B, C, H, W)
    max_err = float(jnp.max(jnp.abs(out - ref)))
    # bf16 MXU operands + approx reciprocal => compare against the f32 reference
    # with a bf16-appropriate tolerance.
    assert jnp.allclose(out, ref, atol=2e-2, rtol=2e-2), \
        f"mismatch vs JAX reference (max abs err {max_err:.3e})"

    print("KERNEL_OK")
</pallas_src>

<mosaic_0001>
module attributes {stable_mosaic.version = 11 : i64} {
  func.func @qkv_proj_kernel(%arg0: i32, %arg1: i32, %arg2: memref<1x128x256xf32, #tpu.memory_space<vmem>>, %arg3: memref<1x128x2xf32, #tpu.memory_space<vmem>>, %arg4: memref<128x128xbf16, #tpu.memory_space<vmem>>, %arg5: memref<128x128xbf16, #tpu.memory_space<vmem>>, %arg6: memref<128x128xbf16, #tpu.memory_space<vmem>>, %arg7: memref<128x3xf32, #tpu.memory_space<vmem>>, %arg8: memref<1x128x256xbf16, #tpu.memory_space<vmem>>, %arg9: memref<1x128x256xbf16, #tpu.memory_space<vmem>>, %arg10: memref<1x128x256xbf16, #tpu.memory_space<vmem>>) attributes {dimension_semantics = [#tpu.dimension_semantics<parallel>, #tpu.dimension_semantics<parallel>], iteration_bounds = array<i64: 2, 1>, scalar_prefetch = 0 : i64, scratch_operands = 0 : i64, tpu.core_type = #tpu.core_type<tc>, window_params = [{transform_indices = @transform_0, window_bounds = array<i64: 1, 128, 256>}, {transform_indices = @transform_1, window_bounds = array<i64: 1, 128, 2>}, {pipeline_mode = #tpu.pipeline_mode<synchronous>, transform_indices = @transform_2, window_bounds = array<i64: 128, 128>}, {pipeline_mode = #tpu.pipeline_mode<synchronous>, transform_indices = @transform_3, window_bounds = array<i64: 128, 128>}, {pipeline_mode = #tpu.pipeline_mode<synchronous>, transform_indices = @transform_4, window_bounds = array<i64: 128, 128>}, {pipeline_mode = #tpu.pipeline_mode<synchronous>, transform_indices = @transform_5, window_bounds = array<i64: 128, 3>}, {transform_indices = @transform_6, window_bounds = array<i64: 1, 128, 256>}, {transform_indices = @transform_7, window_bounds = array<i64: 1, 128, 256>}, {transform_indices = @transform_8, window_bounds = array<i64: 1, 128, 256>}]} {
    %c0 = arith.constant 0 : index
    %c0_0 = arith.constant 0 : index
    %c0_1 = arith.constant 0 : index
    %0 = vector.load %arg3[%c0, %c0_0, %c0_1] : memref<1x128x2xf32, #tpu.memory_space<vmem>>, vector<1x128x2xf32>
    %1 = vector.shape_cast %0 : vector<1x128x2xf32> to vector<128x2xf32>
    %c0_2 = arith.constant 0 : index
    %c0_3 = arith.constant 0 : index
    %c0_4 = arith.constant 0 : index
    %2 = vector.load %arg2[%c0_2, %c0_3, %c0_4] : memref<1x128x256xf32, #tpu.memory_space<vmem>>, vector<1x128x256xf32>
    %3 = vector.shape_cast %2 : vector<1x128x256xf32> to vector<128x256xf32>
    %4 = vector.extract_strided_slice %1 {offsets = [0, 0], sizes = [128, 1], strides = [1, 1]} : vector<128x2xf32> to vector<128x1xf32>
    %5 = vector.broadcast %4 : vector<128x1xf32> to vector<128x256xf32>
    %6 = arith.mulf %3, %5 : vector<128x256xf32>
    %7 = vector.extract_strided_slice %1 {offsets = [0, 1], sizes = [128, 1], strides = [1, 1]} : vector<128x2xf32> to vector<128x1xf32>
    %8 = vector.broadcast %7 : vector<128x1xf32> to vector<128x256xf32>
    %9 = arith.addf %6, %8 : vector<128x256xf32>
    %10 = arith.truncf %9 : vector<128x256xf32> to vector<128x256xbf16>
    %c0_5 = arith.constant 0 : index
    %c0_6 = arith.constant 0 : index
    %11 = vector.load %arg7[%c0_5, %c0_6] : memref<128x3xf32, #tpu.memory_space<vmem>>, vector<128x3xf32>
    %c0_7 = arith.constant 0 : index
    %c0_8 = arith.constant 0 : index
    %12 = vector.load %arg4[%c0_7, %c0_8] : memref<128x128xbf16, #tpu.memory_space<vmem>>, vector<128x128xbf16>
    %cst = arith.constant dense<0.000000e+00> : vector<128x256xf32>
    %13 = tpu.matmul %12, %10, %cst {dimension_numbers = #tpu.dot_dimension_numbers<[1], [0], [0], [1], [0, 0, 1, 1], [], []>} : vector<128x128xbf16>, vector<128x256xbf16>, vector<128x256xf32> -> vector<128x256xf32>
    %14 = vector.extract_strided_slice %11 {offsets = [0, 0], sizes = [128, 1], strides = [1, 1]} : vector<128x3xf32> to vector<128x1xf32>
    %15 = vector.broadcast %14 : vector<128x1xf32> to vector<128x256xf32>
    %16 = arith.addf %13, %15 : vector<128x256xf32>
    %c0_9 = arith.constant 0 : index
    %c0_10 = arith.constant 0 : index
    %17 = vector.load %arg5[%c0_9, %c0_10] : memref<128x128xbf16, #tpu.memory_space<vmem>>, vector<128x128xbf16>
    %cst_11 = arith.constant dense<0.000000e+00> : vector<128x256xf32>
    %18 = tpu.matmul %17, %10, %cst_11 {dimension_numbers = #tpu.dot_dimension_numbers<[1], [0], [0], [1], [0, 0, 1, 1], [], []>} : vector<128x128xbf16>, vector<128x256xbf16>, vector<128x256xf32> -> vector<128x256xf32>
    %19 = vector.extract_strided_slice %11 {offsets = [0, 1], sizes = [128, 1], strides = [1, 1]} : vector<128x3xf32> to vector<128x1xf32>
    %20 = vector.broadcast %19 : vector<128x1xf32> to vector<128x256xf32>
    %21 = arith.addf %18, %20 : vector<128x256xf32>
    %c0_12 = arith.constant 0 : index
    %c0_13 = arith.constant 0 : index
    %22 = vector.load %arg6[%c0_12, %c0_13] : memref<128x128xbf16, #tpu.memory_space<vmem>>, vector<128x128xbf16>
    %cst_14 = arith.constant dense<0.000000e+00> : vector<128x256xf32>
    %23 = tpu.matmul %22, %10, %cst_14 {dimension_numbers = #tpu.dot_dimension_numbers<[1], [0], [0], [1], [0, 0, 1, 1], [], []>} : vector<128x128xbf16>, vector<128x256xbf16>, vector<128x256xf32> -> vector<128x256xf32>
    %24 = vector.extract_strided_slice %11 {offsets = [0, 2], sizes = [128, 1], strides = [1, 1]} : vector<128x3xf32> to vector<128x1xf32>
    %25 = vector.broadcast %24 : vector<128x1xf32> to vector<128x256xf32>
    %26 = arith.addf %23, %25 : vector<128x256xf32>
    %27 = arith.truncf %16 : vector<128x256xf32> to vector<128x256xbf16>
    %c0_15 = arith.constant 0 : index
    %c0_16 = arith.constant 0 : index
    %c0_17 = arith.constant 0 : index
    %28 = vector.load %arg8[%c0_15, %c0_16, %c0_17] : memref<1x128x256xbf16, #tpu.memory_space<vmem>>, vector<1x128x256xbf16>
    %29 = vector.shape_cast %28 : vector<1x128x256xbf16> to vector<128x256xbf16>
    %30 = vector.shape_cast %27 : vector<128x256xbf16> to vector<1x128x256xbf16>
    tpu.vector_store %arg8[%c0_15, %c0_16, %c0_17], %30 {strides = array<i32>} : memref<1x128x256xbf16, #tpu.memory_space<vmem>>, vector<1x128x256xbf16>,
    %31 = arith.truncf %21 : vector<128x256xf32> to vector<128x256xbf16>
    %c0_18 = arith.constant 0 : index
    %c0_19 = arith.constant 0 : index
    %c0_20 = arith.constant 0 : index
    %32 = vector.load %arg9[%c0_18, %c0_19, %c0_20] : memref<1x128x256xbf16, #tpu.memory_space<vmem>>, vector<1x128x256xbf16>
    %33 = vector.shape_cast %32 : vector<1x128x256xbf16> to vector<128x256xbf16>
    %34 = vector.shape_cast %31 : vector<128x256xbf16> to vector<1x128x256xbf16>
    tpu.vector_store %arg9[%c0_18, %c0_19, %c0_20], %34 {strides = array<i32>} : memref<1x128x256xbf16, #tpu.memory_space<vmem>>, vector<1x128x256xbf16>,
    %35 = arith.truncf %26 : vector<128x256xf32> to vector<128x256xbf16>
    %c0_21 = arith.constant 0 : index
    %c0_22 = arith.constant 0 : index
    %c0_23 = arith.constant 0 : index
    %36 = vector.load %arg10[%c0_21, %c0_22, %c0_23] : memref<1x128x256xbf16, #tpu.memory_space<vmem>>, vector<1x128x256xbf16>
    %37 = vector.shape_cast %36 : vector<1x128x256xbf16> to vector<128x256xbf16>
    %38 = vector.shape_cast %35 : vector<128x256xbf16> to vector<1x128x256xbf16>
    tpu.vector_store %arg10[%c0_21, %c0_22, %c0_23], %38 {strides = array<i32>} : memref<1x128x256xbf16, #tpu.memory_space<vmem>>, vector<1x128x256xbf16>,
    return
  }
  func.func @transform_0(%arg0: i32, %arg1: i32) -> (i32, i32, i32) {
    %c0_i32 = arith.constant 0 : i32
    %c0_i32_0 = arith.constant 0 : i32
    return %arg0, %c0_i32, %arg1 : i32, i32, i32
  }
  func.func @transform_1(%arg0: i32, %arg1: i32) -> (i32, i32, i32) {
    %c0_i32 = arith.constant 0 : i32
    %c0_i32_0 = arith.constant 0 : i32
    %c0_i32_1 = arith.constant 0 : i32
    return %arg0, %c0_i32, %c0_i32_0 : i32, i32, i32
  }
  func.func @transform_2(%arg0: i32, %arg1: i32) -> (i32, i32) {
    %c0_i32 = arith.constant 0 : i32
    %c0_i32_0 = arith.constant 0 : i32
    %c0_i32_1 = arith.constant 0 : i32
    return %c0_i32, %c0_i32_0 : i32, i32
  }
  func.func @transform_3(%arg0: i32, %arg1: i32) -> (i32, i32) {
    %c0_i32 = arith.constant 0 : i32
    %c0_i32_0 = arith.constant 0 : i32
    %c0_i32_1 = arith.constant 0 : i32
    return %c0_i32, %c0_i32_0 : i32, i32
  }
  func.func @transform_4(%arg0: i32, %arg1: i32) -> (i32, i32) {
    %c0_i32 = arith.constant 0 : i32
    %c0_i32_0 = arith.constant 0 : i32
    %c0_i32_1 = arith.constant 0 : i32
    return %c0_i32, %c0_i32_0 : i32, i32
  }
  func.func @transform_5(%arg0: i32, %arg1: i32) -> (i32, i32) {
    %c0_i32 = arith.constant 0 : i32
    %c0_i32_0 = arith.constant 0 : i32
    %c0_i32_1 = arith.constant 0 : i32
    return %c0_i32, %c0_i32_0 : i32, i32
  }
  func.func @transform_6(%arg0: i32, %arg1: i32) -> (i32, i32, i32) {
    %c0_i32 = arith.constant 0 : i32
    %c0_i32_0 = arith.constant 0 : i32
    return %arg0, %c0_i32, %arg1 : i32, i32, i32
  }
  func.func @transform_7(%arg0: i32, %arg1: i32) -> (i32, i32, i32) {
    %c0_i32 = arith.constant 0 : i32
    %c0_i32_0 = arith.constant 0 : i32
    return %arg0, %c0_i32, %arg1 : i32, i32, i32
  }
  func.func @transform_8(%arg0: i32, %arg1: i32) -> (i32, i32, i32) {
    %c0_i32 = arith.constant 0 : i32
    %c0_i32_0 = arith.constant 0 : i32
    return %arg0, %c0_i32, %arg1 : i32, i32, i32
  }
}

</mosaic_0001>

<llo_original>
// kernel: tpu_custom_call.1
$region0: #{tpu_custom_call.1}
  #allocation0 [shape = 'u32[]', space=smem, size = 0x4, offset = 0x4, fixed_abs, tag = 'smem constant byte address 0x4 - core index']
  #allocation1 [shape = 'u32[144,128]{1,0:T(1,128)}', space=vmem, size = 0x12000, scoped, tag = 'internal scratch']
  %s0 = inlined_call_operand.hbm [shape: f32[2,128,256], index: 0, kind: input, shape index: {}]
  %s1 = inlined_call_operand.vmem [shape: f32[2,128,2], index: 1, kind: input, shape index: {}]
  %s2 = inlined_call_operand.vmem [shape: bf16[128,128], index: 2, kind: input, shape index: {}]
  %s3 = inlined_call_operand.vmem [shape: bf16[128,128], index: 3, kind: input, shape index: {}]
  %s4 = inlined_call_operand.vmem [shape: bf16[128,128], index: 4, kind: input, shape index: {}]
  %s5 = inlined_call_operand.vmem [shape: f32[128,3], index: 5, kind: input, shape index: {}]
  %s6 = inlined_call_operand.hbm [shape: bf16[2,128,256], index: 6, kind: output, shape index: {0}]
  %s7 = inlined_call_operand.hbm [shape: bf16[2,128,256], index: 7, kind: output, shape index: {1}]
  %s8 = inlined_call_operand.hbm [shape: bf16[2,128,256], index: 8, kind: output, shape index: {2}]
  %9 = xla_tuple %s6, %s7, %s8
  %s10 = sld [smem:[#allocation0]]
  $region77: #{tpu_custom_call.1} parent=0
    _
  %s12 = ssub.s32 1, %s10
  %s13 = scalar_select 0, %s12, %s10
  $region1: #{tpu_custom_call.1} parent=0
    #allocation2 [shape = 'u8[262144]{0}', space=vmem, size = 0x40000, scoped, tag = 'input window, operand 0']
    #allocation3 [shape = 's32[2]{0}', space=sflag, size = 0x8, scoped, tag = 'scoped memory for tpu_custom_call.1']
    #allocation4 [shape = 's32[2]{0}', space=sflag, size = 0x8, scoped, tag = 'scoped memory for tpu_custom_call.1']
    #allocation5 [shape = 'u8[131072]{0}', space=vmem, size = 0x20000, scoped, tag = 'output window, operand 0']
    #allocation6 [shape = 'u8[131072]{0}', space=vmem, size = 0x20000, scoped, tag = 'output window, operand 1']
    #allocation7 [shape = 's32[2]{0}', space=sflag, size = 0x8, scoped, tag = 'scoped memory for tpu_custom_call.1']
    #allocation8 [shape = 'u8[131072]{0}', space=vmem, size = 0x20000, scoped, tag = 'output window, operand 2']
    %14 = vsyncpa [#allocation3], 0
    %s15 = scalar_lea.sflag [#allocation3], 1
    %16 = vsyncpa %s15, 0
    %17 = vsyncpa [#allocation4], 0
    %s18 = scalar_lea.sflag [#allocation4], 1
    %19 = vsyncpa %s18, 0
    %20 = vsyncpa [#allocation7], 0
    %s21 = scalar_lea.sflag [#allocation7], 1
    %22 = vsyncpa %s21, 0
    loop: start=0, step=1, limit=4
    $region2: #{tpu_custom_call.1} parent=1 // loop_pre_header
      _
    $region3: #{tpu_custom_call.1} parent=1 // loop_header
      %s24 = sphi 0, %s28
      %p25 = scmp.ge.s32.totalorder %s24, 4
      %s31 = sphi 0, %s43
      %s32 = sphi 0, %s39
      %s33 = sphi 0, %s31
      %s34 = sphi 0, %s32
      %s35 = sphi 0, %s33
      %s36 = sphi 0, %s34
      %s48 = sphi 0, %s50
      %s51 = sphi 0, %s48
      %s52 = sphi 0, %s51
      %s68 = sphi 0, %s52
      %s74 = sphi 0, %s76
      %s77 = sphi 0, %s74
      %s78 = sphi 0, %s77
      %s94 = sphi 0, %s78
      %s98 = sphi 0, %s98
      %s100 = sphi 0, %s98
      %s101 = sphi 0, %s100
      %s115 = sphi 0, %s101
      %s119 = sphi 0, %s119
      %s121 = sphi 0, %s119
      %s122 = sphi 0, %s121
      %s136 = sphi 0, %s122
      %s140 = sphi 0, %s140
      %s142 = sphi 0, %s140
      %s143 = sphi 0, %s142
      %s157 = sphi 0, %s143
      %s161 = sphi 0, %s161
      %s163 = sphi 0, %s161
      %s164 = sphi 0, %s163
      %s178 = sphi 0, %s164
      %s186 = sphi 0, %s188
      %s189 = sphi 0, %s186
      %s190 = sphi 0, %s189
      %s206 = sphi 0, %s190
      %s214 = sphi 0, %s216
      %s217 = sphi 0, %s214
      %s218 = sphi 0, %s217
      %s234 = sphi 0, %s218
      %s242 = sphi 0, %s244
      %s245 = sphi 0, %s242
      %s246 = sphi 0, %s245
      %s262 = sphi 0, %s246
    $region4: #{tpu_custom_call.1} parent=1 // loop_header_branch
      %27 = sbr.rel (%p25) target = $region8
    $region5: #{tpu_custom_call.1} parent=1 // loop_body
      %s29 = ssub.s32 %s24, 1
      %s30 = ssub.s32 %s24, 2
      %s37 = sadd.s32 1, %s32
      %p38 = scmp.ge.s32.totalorder %s37, 1
      %s39 = scalar_select %p38, 0, %s37
      %s40 = sadd.s32 1, %s31
      %s41 = scalar_select %p38, %s40, %s31
      %p42 = scmp.ge.s32.totalorder %s41, 2
      %s43 = scalar_select %p42, 0, %s41
      %s44 = ssub.s32 %s31, %s43
      %s45 = ssub.s32 %s32, %s39
      %s46 = sor.u32 %s44, %s45
      %p47 = scmp.eq.s32.totalorder %s46, 0
      %s49 = sadd.s32 %s48, 1
      %s50 = scalar_select %p47, %s48, %s49
      %p53 = pneg %p47
      %p54 = scmp.eq.s32.totalorder %s24, 1
      %p55 = por %p53, %p54
      %p56 = scmp.ne.s32.totalorder %s48, %s51
      %p57 = scmp.eq.s32.totalorder %s24, 0
      %p58 = por %p56, %p57
      %p59 = scmp.ne.s32.totalorder %s48, %s51
      %p60 = scmp.eq.s32.totalorder %s29, 1
      %p61 = por %p59, %p60
      %p62 = scmp.ne.s32.totalorder %s51, %s52
      %p63 = scmp.eq.s32.totalorder %s29, 0
      %p64 = por %p62, %p63
      %p65 = scmp.ne.s32.totalorder %s51, %s52
      %p66 = scmp.eq.s32.totalorder %s30, 1
      %p67 = por %p65, %p66
      %p69 = scmp.ne.s32.totalorder %s52, %s68
      %p70 = scmp.eq.s32.totalorder %s30, 0
      %p71 = por %p69, %p70
      %s72 = ssub.s32 %s31, %s43
      %p73 = scmp.eq.s32.totalorder %s72, 0
      %s75 = sadd.s32 %s74, 1
      %s76 = scalar_select %p73, %s74, %s75
      %p79 = pneg %p73
      %p80 = scmp.eq.s32.totalorder %s24, 1
      %p81 = por %p79, %p80
      %p82 = scmp.ne.s32.totalorder %s74, %s77
      %p83 = scmp.eq.s32.totalorder %s24, 0
      %p84 = por %p82, %p83
      %p85 = scmp.ne.s32.totalorder %s74, %s77
      %p86 = scmp.eq.s32.totalorder %s29, 1
      %p87 = por %p85, %p86
      %p88 = scmp.ne.s32.totalorder %s77, %s78
      %p89 = scmp.eq.s32.totalorder %s29, 0
      %p90 = por %p88, %p89
      %p91 = scmp.ne.s32.totalorder %s77, %s78
      %p92 = scmp.eq.s32.totalorder %s30, 1
      %p93 = por %p91, %p92
      %p95 = scmp.ne.s32.totalorder %s78, %s94
      %p96 = scmp.eq.s32.totalorder %s30, 0
      %p97 = por %p95, %p96
      %s99 = sadd.s32 %s98, 1
      %p102 = scmp.eq.s32.totalorder %s24, 1
      %p103 = scmp.ne.s32.totalorder %s98, %s100
      %p104 = scmp.eq.s32.totalorder %s24, 0
      %p105 = por %p103, %p104
      %p106 = scmp.ne.s32.totalorder %s98, %s100
      %p107 = scmp.eq.s32.totalorder %s29, 1
      %p108 = por %p106, %p107
      %p109 = scmp.ne.s32.totalorder %s100, %s101
      %p110 = scmp.eq.s32.totalorder %s29, 0
      %p111 = por %p109, %p110
      %p112 = scmp.ne.s32.totalorder %s100, %s101
      %p113 = scmp.eq.s32.totalorder %s30, 1
      %p114 = por %p112, %p113
      %p116 = scmp.ne.s32.totalorder %s101, %s115
      %p117 = scmp.eq.s32.totalorder %s30, 0
      %p118 = por %p116, %p117
      %s120 = sadd.s32 %s119, 1
      %p123 = scmp.eq.s32.totalorder %s24, 1
      %p124 = scmp.ne.s32.totalorder %s119, %s121
      %p125 = scmp.eq.s32.totalorder %s24, 0
      %p126 = por %p124, %p125
      %p127 = scmp.ne.s32.totalorder %s119, %s121
      %p128 = scmp.eq.s32.totalorder %s29, 1
      %p129 = por %p127, %p128
      %p130 = scmp.ne.s32.totalorder %s121, %s122
      %p131 = scmp.eq.s32.totalorder %s29, 0
      %p132 = por %p130, %p131
      %p133 = scmp.ne.s32.totalorder %s121, %s122
      %p134 = scmp.eq.s32.totalorder %s30, 1
      %p135 = por %p133, %p134
      %p137 = scmp.ne.s32.totalorder %s122, %s136
      %p138 = scmp.eq.s32.totalorder %s30, 0
      %p139 = por %p137, %p138
      %s141 = sadd.s32 %s140, 1
      %p144 = scmp.eq.s32.totalorder %s24, 1
      %p145 = scmp.ne.s32.totalorder %s140, %s142
      %p146 = scmp.eq.s32.totalorder %s24, 0
      %p147 = por %p145, %p146
      %p148 = scmp.ne.s32.totalorder %s140, %s142
      %p149 = scmp.eq.s32.totalorder %s29, 1
      %p150 = por %p148, %p149
      %p151 = scmp.ne.s32.totalorder %s142, %s143
      %p152 = scmp.eq.s32.totalorder %s29, 0
      %p153 = por %p151, %p152
      %p154 = scmp.ne.s32.totalorder %s142, %s143
      %p155 = scmp.eq.s32.totalorder %s30, 1
      %p156 = por %p154, %p155
      %p158 = scmp.ne.s32.totalorder %s143, %s157
      %p159 = scmp.eq.s32.totalorder %s30, 0
      %p160 = por %p158, %p159
      %s162 = sadd.s32 %s161, 1
      %p165 = scmp.eq.s32.totalorder %s24, 1
      %p166 = scmp.ne.s32.totalorder %s161, %s163
      %p167 = scmp.eq.s32.totalorder %s24, 0
      %p168 = por %p166, %p167
      %p169 = scmp.ne.s32.totalorder %s161, %s163
      %p170 = scmp.eq.s32.totalorder %s29, 1
      %p171 = por %p169, %p170
      %p172 = scmp.ne.s32.totalorder %s163, %s164
      %p173 = scmp.eq.s32.totalorder %s29, 0
      %p174 = por %p172, %p173
      %p175 = scmp.ne.s32.totalorder %s163, %s164
      %p176 = scmp.eq.s32.totalorder %s30, 1
      %p177 = por %p175, %p176
      %p179 = scmp.ne.s32.totalorder %s164, %s178
      %p180 = scmp.eq.s32.totalorder %s30, 0
      %p181 = por %p179, %p180
      %s182 = ssub.s32 %s31, %s43
      %s183 = ssub.s32 %s32, %s39
      %s184 = sor.u32 %s182, %s183
      %p185 = scmp.eq.s32.totalorder %s184, 0
      %s187 = sadd.s32 %s186, 1
      %s188 = scalar_select %p185, %s186, %s187
      %p191 = pneg %p185
      %p192 = scmp.eq.s32.totalorder %s24, 1
      %p193 = por %p191, %p192
      %p194 = scmp.ne.s32.totalorder %s186, %s189
      %p195 = scmp.eq.s32.totalorder %s24, 0
      %p196 = por %p194, %p195
      %p197 = scmp.ne.s32.totalorder %s186, %s189
      %p198 = scmp.eq.s32.totalorder %s29, 1
      %p199 = por %p197, %p198
      %p200 = scmp.ne.s32.totalorder %s189, %s190
      %p201 = scmp.eq.s32.totalorder %s29, 0
      %p202 = por %p200, %p201
      %p203 = scmp.ne.s32.totalorder %s189, %s190
      %p204 = scmp.eq.s32.totalorder %s30, 1
      %p205 = por %p203, %p204
      %p207 = scmp.ne.s32.totalorder %s190, %s206
      %p208 = scmp.eq.s32.totalorder %s30, 0
      %p209 = por %p207, %p208
      %s210 = ssub.s32 %s31, %s43
      %s211 = ssub.s32 %s32, %s39
      %s212 = sor.u32 %s210, %s211
      %p213 = scmp.eq.s32.totalorder %s212, 0
      %s215 = sadd.s32 %s214, 1
      %s216 = scalar_select %p213, %s214, %s215
      %p219 = pneg %p213
      %p220 = scmp.eq.s32.totalorder %s24, 1
      %p221 = por %p219, %p220
      %p222 = scmp.ne.s32.totalorder %s214, %s217
      %p223 = scmp.eq.s32.totalorder %s24, 0
      %p224 = por %p222, %p223
      %p225 = scmp.ne.s32.totalorder %s214, %s217
      %p226 = scmp.eq.s32.totalorder %s29, 1
      %p227 = por %p225, %p226
      %p228 = scmp.ne.s32.totalorder %s217, %s218
      %p229 = scmp.eq.s32.totalorder %s29, 0
      %p230 = por %p228, %p229
      %p231 = scmp.ne.s32.totalorder %s217, %s218
      %p232 = scmp.eq.s32.totalorder %s30, 1
      %p233 = por %p231, %p232
      %p235 = scmp.ne.s32.totalorder %s218, %s234
      %p236 = scmp.eq.s32.totalorder %s30, 0
      %p237 = por %p235, %p236
      %s238 = ssub.s32 %s31, %s43
      %s239 = ssub.s32 %s32, %s39
      %s240 = sor.u32 %s238, %s239
      %p241 = scmp.eq.s32.totalorder %s240, 0
      %s243 = sadd.s32 %s242, 1
      %s244 = scalar_select %p241, %s242, %s243
      %p247 = pneg %p241
      %p248 = scmp.eq.s32.totalorder %s24, 1
      %p249 = por %p247, %p248
      %p250 = scmp.ne.s32.totalorder %s242, %s245
      %p251 = scmp.eq.s32.totalorder %s24, 0
      %p252 = por %p250, %p251
      %p253 = scmp.ne.s32.totalorder %s242, %s245
      %p254 = scmp.eq.s32.totalorder %s29, 1
      %p255 = por %p253, %p254
      %p256 = scmp.ne.s32.totalorder %s245, %s246
      %p257 = scmp.eq.s32.totalorder %s29, 0
      %p258 = por %p256, %p257
      %p259 = scmp.ne.s32.totalorder %s245, %s246
      %p260 = scmp.eq.s32.totalorder %s30, 1
      %p261 = por %p259, %p260
      %p263 = scmp.ne.s32.totalorder %s246, %s262
      %p264 = scmp.eq.s32.totalorder %s30, 0
      %p265 = por %p263, %p264
      %p266 = scmp.le.s32.totalorder 1, %s24
      %p267 = scmp.lt.s32.totalorder %s24, 3
      %p268 = pnand %p266, %p267
      %p269 = pneg %p268
      // Predicated region
      $region9: #{tpu_custom_call.1} parent=5 // pred_check
        _
      $region10: #{tpu_custom_call.1} parent=5 // pred_check_branch
        %271 = sbr.rel (%p268) target = $region12
      $region11: #{tpu_custom_call.1} parent=5 // pred_region
        %s272 = ssub.s32 %s24, 1
        // Predicated region
        $region13: #{tpu_custom_call.1} parent=11 // pred_check
          %p273 = pneg %p111
        $region14: #{tpu_custom_call.1} parent=11 // pred_check_branch
          %275 = sbr.rel (%p273) target = $region16
        $region15: #{tpu_custom_call.1} parent=11 // pred_region
          _
        $region16: #{tpu_custom_call.1} parent=11 // pred_fallthru
          _
        // Predicated region
        $region17: #{tpu_custom_call.1} parent=11 // pred_check
          %p276 = pneg %p132
        $region18: #{tpu_custom_call.1} parent=11 // pred_check_branch
          %278 = sbr.rel (%p276) target = $region20
        $region19: #{tpu_custom_call.1} parent=11 // pred_region
          _
        $region20: #{tpu_custom_call.1} parent=11 // pred_fallthru
          _
        // Predicated region
        $region21: #{tpu_custom_call.1} parent=11 // pred_check
          %p279 = pneg %p153
        $region22: #{tpu_custom_call.1} parent=11 // pred_check_branch
          %281 = sbr.rel (%p279) target = $region24
        $region23: #{tpu_custom_call.1} parent=11 // pred_region
          _
        $region24: #{tpu_custom_call.1} parent=11 // pred_fallthru
          _
        // Predicated region
        $region25: #{tpu_custom_call.1} parent=11 // pred_check
          %p282 = pneg %p174
        $region26: #{tpu_custom_call.1} parent=11 // pred_check_branch
          %284 = sbr.rel (%p282) target = $region28
        $region27: #{tpu_custom_call.1} parent=11 // pred_region
          _
        $region28: #{tpu_custom_call.1} parent=11 // pred_fallthru
          _
      $region12: #{tpu_custom_call.1} parent=5 // pred_fallthru
        _
      %p285 = scmp.lt.s32.totalorder %s24, 2
      // Predicated region
      $region29: #{tpu_custom_call.1} parent=5 // pred_check
        %p286 = pneg %p285
      $region30: #{tpu_custom_call.1} parent=5 // pred_check_branch
        %288 = sbr.rel (%p286) target = $region32
      $region31: #{tpu_custom_call.1} parent=5 // pred_region
        // Predicated region
        $region33: #{tpu_custom_call.1} parent=31 // pred_check
          %p289 = pneg %p58
        $region34: #{tpu_custom_call.1} parent=31 // pred_check_branch
          %291 = sbr.rel (%p289) target = $region36
        $region35: #{tpu_custom_call.1} parent=31 // pred_region
          %s292 = sand.u32 %s48, 1
          %s293 = scalar_lea.sflag [#allocation3], %s292
          %s294 = sand.u32 %s48, 1
          %s295 = smul.addr %s294, 256
          %s296 = scalar_lea.vmem [#allocation2], %s295
          %s297 = smul.u32 2, %s32
          %s299 = ssub.s32 4096, 4096
          %300 = vsyncadd %s293, %s299
          %s301 = smul.addr %s31, 32
          %s302 = sadd.s32 %s297, %s301
          %s303 = smul.addr %s302, 128
          %s304 = scalar_lea.hbm %s0, %s303
          %s305 = sshll.u32 %s296, 4
          %s306 = int_to_ptr.vmem [resolvable:$true] %s305
          %311 = dma.hbm_to_vmem [thread:$0]  %s304, 4096, %s306, %s293, 256, 256, 16
        $region36: #{tpu_custom_call.1} parent=31 // pred_fallthru
          _
        // Predicated region
        $region37: #{tpu_custom_call.1} parent=31 // pred_check
          %p312 = pneg %p84
        $region38: #{tpu_custom_call.1} parent=31 // pred_check_branch
          %314 = sbr.rel (%p312) target = $region40
        $region39: #{tpu_custom_call.1} parent=31 // pred_region
          %p315 = scmp.lt.s32.totalorder %s31, 1
          %s316 = scalar_select %p315, %s31, 1
          %s317 = smul.addr %s316, 16
          %s318 = smul.addr %s317, 8
          %s319 = scalar_lea.vmem %s1, %s318
        $region40: #{tpu_custom_call.1} parent=31 // pred_fallthru
          _
      $region32: #{tpu_custom_call.1} parent=5 // pred_fallthru
        _
      %p320 = scmp.le.s32.totalorder 1, %s24
      %p321 = scmp.lt.s32.totalorder %s24, 3
      %p322 = pnand %p320, %p321
      %p323 = pneg %p322
      // Predicated region
      $region41: #{tpu_custom_call.1} parent=5 // pred_check
        _
      $region42: #{tpu_custom_call.1} parent=5 // pred_check_branch
        %325 = sbr.rel (%p322) target = $region44
      $region43: #{tpu_custom_call.1} parent=5 // pred_region
        %s326 = ssub.s32 %s24, 1
        %s327 = sand.u32 %s51, 1
        %s328 = scalar_lea.sflag [#allocation3], %s327
        %s329 = sand.u32 %s51, 1
        %s330 = smul.addr %s329, 256
        %s331 = scalar_lea.vmem [#allocation2], %s330
        // Predicated region
        $region45: #{tpu_custom_call.1} parent=43 // pred_check
          %p332 = pneg %p64
        $region46: #{tpu_custom_call.1} parent=43 // pred_check_branch
          %334 = sbr.rel (%p332) target = $region48
        $region47: #{tpu_custom_call.1} parent=43 // pred_region
          %335 = dma.done %s328, 4096
        $region48: #{tpu_custom_call.1} parent=43 // pred_fallthru
          _
        %s336 = sand.u32 %s51, 1
        %s337 = scalar_lea.sflag [#allocation3], %s336
        %s338 = sand.u32 %s51, 1
        %s339 = smul.addr %s338, 256
        %s340 = scalar_lea.vmem [#allocation2], %s339
        %p341 = pneg %p64
        %p342 = pneg %p61
        %p343 = scmp.lt.s32.totalorder %s33, 1
        %s344 = scalar_select %p343, %s33, 1
        %s345 = smul.addr %s344, 16
        %s346 = smul.addr %s345, 8
        %s347 = scalar_lea.vmem %s1, %s346
        %p348 = pneg %p90
        %p349 = pneg %p87
        %p350 = pneg %p111
        %p351 = pneg %p108
        %p352 = pneg %p132
        %p353 = pneg %p129
        %p354 = pneg %p153
        %p355 = pneg %p150
        %p356 = pneg %p174
        %p357 = pneg %p171
        %p358 = pneg %p202
        %p359 = pneg %p199
        %s360 = sand.u32 %s189, 1
        %s361 = scalar_lea.sflag [#allocation4], %s360
        %s362 = sand.u32 %s189, 1
        %s363 = smul.addr %s362, 128
        %s364 = scalar_lea.vmem [#allocation5], %s363
        %p365 = pneg %p230
        %p366 = pneg %p227
        %s367 = sand.u32 %s29, 1
        %s368 = scalar_lea.sflag [#allocation7], %s367
        %s369 = sand.u32 %s217, 1
        %s370 = smul.addr %s369, 128
        %s371 = scalar_lea.vmem [#allocation6], %s370
        %p372 = pneg %p258
        %p373 = pneg %p255
        %s374 = sand.u32 %s29, 1
        %s375 = scalar_lea.sflag [#allocation7], %s374
        %s376 = sand.u32 %s245, 1
        %s377 = smul.addr %s376, 128
        %s378 = scalar_lea.vmem [#allocation8], %s377
        %s379 = smul.u32 2, %s34
        %p380 = scmp.lt.s32.totalorder %s33, 1
        %s381 = scalar_select %p380, %s33, 1
        %s382 = smul.addr %s381, 16
        %s383 = smul.addr %s382, 8
        %s384 = scalar_lea.vmem %s1, %s383
        %s385 = smul.u32 2, %s34
        %s386 = smul.u32 2, %s34
        %s387 = smul.u32 2, %s34
        %v389 = vld [vmem:[%s384] sm:$0xff]
        %v390 = vld [vmem:[%s384 + $0x8] sm:$0xff]
        %v391 = vld [vmem:[%s384 + $0x10] sm:$0xff]
        %v392 = vld [vmem:[%s384 + $0x18] sm:$0xff]
        %v393 = vld [vmem:[%s384 + $0x20] sm:$0xff]
        %v394 = vld [vmem:[%s384 + $0x28] sm:$0xff]
        %v395 = vld [vmem:[%s384 + $0x30] sm:$0xff]
        %v396 = vld [vmem:[%s384 + $0x38] sm:$0xff]
        %v397 = vld [vmem:[%s384 + $0x40] sm:$0xff]
        %v398 = vld [vmem:[%s384 + $0x48] sm:$0xff]
        %v399 = vld [vmem:[%s384 + $0x50] sm:$0xff]
        %v400 = vld [vmem:[%s384 + $0x58] sm:$0xff]
        %v401 = vld [vmem:[%s384 + $0x60] sm:$0xff]
        %v402 = vld [vmem:[%s384 + $0x68] sm:$0xff]
        %v403 = vld [vmem:[%s384 + $0x70] sm:$0xff]
        %v404 = vld [vmem:[%s384 + $0x78] sm:$0xff]
        %v405 = vld [vmem:[%s331] sm:$0xff]
        %v406 = vld [vmem:[%s331 + $0x8] sm:$0xff]
        %v407 = vld [vmem:[%s331 + $0x10] sm:$0xff]
        %v408 = vld [vmem:[%s331 + $0x18] sm:$0xff]
        %v409 = vld [vmem:[%s331 + $0x20] sm:$0xff]
        %v410 = vld [vmem:[%s331 + $0x28] sm:$0xff]
        %v411 = vld [vmem:[%s331 + $0x30] sm:$0xff]
        %v412 = vld [vmem:[%s331 + $0x38] sm:$0xff]
        %v413 = vld [vmem:[%s331 + $0x40] sm:$0xff]
        %v414 = vld [vmem:[%s331 + $0x48] sm:$0xff]
        %v415 = vld [vmem:[%s331 + $0x50] sm:$0xff]
        %v416 = vld [vmem:[%s331 + $0x58] sm:$0xff]
        %v417 = vld [vmem:[%s331 + $0x60] sm:$0xff]
        %v418 = vld [vmem:[%s331 + $0x68] sm:$0xff]
        %v419 = vld [vmem:[%s331 + $0x70] sm:$0xff]
        %v420 = vld [vmem:[%s331 + $0x78] sm:$0xff]
        %v421 = vld [vmem:[%s331 + $0x80] sm:$0xff]
        %v422 = vld [vmem:[%s331 + $0x88] sm:$0xff]
        %v423 = vld [vmem:[%s331 + $0x90] sm:$0xff]
        %v424 = vld [vmem:[%s331 + $0x98] sm:$0xff]
        %v425 = vld [vmem:[%s331 + $0xa0] sm:$0xff]
        %v426 = vld [vmem:[%s331 + $0xa8] sm:$0xff]
        %v427 = vld [vmem:[%s331 + $0xb0] sm:$0xff]
        %v428 = vld [vmem:[%s331 + $0xb8] sm:$0xff]
        %v429 = vld [vmem:[%s331 + $0xc0] sm:$0xff]
        %v430 = vld [vmem:[%s331 + $0xc8] sm:$0xff]
        %v431 = vld [vmem:[%s331 + $0xd0] sm:$0xff]
        %v432 = vld [vmem:[%s331 + $0xd8] sm:$0xff]
        %v433 = vld [vmem:[%s331 + $0xe0] sm:$0xff]
        %v434 = vld [vmem:[%s331 + $0xe8] sm:$0xff]
        %v435 = vld [vmem:[%s331 + $0xf0] sm:$0xff]
        %v436 = vld [vmem:[%s331 + $0xf8] sm:$0xff]
        %438 = vset.pattern.permute.xlu0 0
        %439 = vperm.xlu0 %438, %v389
        %v440 = vpop.permute.xlu0 %439
        %443 = vset.pattern.permute.xlu0 0
        %444 = vperm.xlu0 %443, %v390
        %v445 = vpop.permute.xlu0 %444
        %448 = vset.pattern.permute.xlu0 0
        %449 = vperm.xlu0 %448, %v391
        %v450 = vpop.permute.xlu0 %449
        %453 = vset.pattern.permute.xlu0 0
        %454 = vperm.xlu0 %453, %v392
        %v455 = vpop.permute.xlu0 %454
        %458 = vset.pattern.permute.xlu0 0
        %459 = vperm.xlu0 %458, %v393
        %v460 = vpop.permute.xlu0 %459
        %463 = vset.pattern.permute.xlu0 0
        %464 = vperm.xlu0 %463, %v394
        %v465 = vpop.permute.xlu0 %464
        %468 = vset.pattern.permute.xlu0 0
        %469 = vperm.xlu0 %468, %v395
        %v470 = vpop.permute.xlu0 %469
        %473 = vset.pattern.permute.xlu0 0
        %474 = vperm.xlu0 %473, %v396
        %v475 = vpop.permute.xlu0 %474
        %478 = vset.pattern.permute.xlu0 0
        %479 = vperm.xlu0 %478, %v397
        %v480 = vpop.permute.xlu0 %479
        %483 = vset.pattern.permute.xlu0 0
        %484 = vperm.xlu0 %483, %v398
        %v485 = vpop.permute.xlu0 %484
        %488 = vset.pattern.permute.xlu0 0
        %489 = vperm.xlu0 %488, %v399
        %v490 = vpop.permute.xlu0 %489
        %493 = vset.pattern.permute.xlu0 0
        %494 = vperm.xlu0 %493, %v400
        %v495 = vpop.permute.xlu0 %494
        %498 = vset.pattern.permute.xlu0 0
        %499 = vperm.xlu0 %498, %v401
        %v500 = vpop.permute.xlu0 %499
        %503 = vset.pattern.permute.xlu0 0
        %504 = vperm.xlu0 %503, %v402
        %v505 = vpop.permute.xlu0 %504
        %508 = vset.pattern.permute.xlu0 0
        %509 = vperm.xlu0 %508, %v403
        %v510 = vpop.permute.xlu0 %509
        %513 = vset.pattern.permute.xlu0 0
        %514 = vperm.xlu0 %513, %v404
        %v515 = vpop.permute.xlu0 %514
        %v517 = vmul.f32 %v405, %v440
        %v518 = vmul.f32 %v406, %v440
        %v519 = vmul.f32 %v407, %v445
        %v520 = vmul.f32 %v408, %v445
        %v521 = vmul.f32 %v409, %v450
        %v522 = vmul.f32 %v410, %v450
        %v523 = vmul.f32 %v411, %v455
        %v524 = vmul.f32 %v412, %v455
        %v525 = vmul.f32 %v413, %v460
        %v526 = vmul.f32 %v414, %v460
        %v527 = vmul.f32 %v415, %v465
        %v528 = vmul.f32 %v416, %v465
        %v529 = vmul.f32 %v417, %v470
        %v530 = vmul.f32 %v418, %v470
        %v531 = vmul.f32 %v419, %v475
        %v532 = vmul.f32 %v420, %v475
        %v533 = vmul.f32 %v421, %v480
        %v534 = vmul.f32 %v422, %v480
        %v535 = vmul.f32 %v423, %v485
        %v536 = vmul.f32 %v424, %v485
        %v537 = vmul.f32 %v425, %v490
        %v538 = vmul.f32 %v426, %v490
        %v539 = vmul.f32 %v427, %v495
        %v540 = vmul.f32 %v428, %v495
        %v541 = vmul.f32 %v429, %v500
        %v542 = vmul.f32 %v430, %v500
        %v543 = vmul.f32 %v431, %v505
        %v544 = vmul.f32 %v432, %v505
        %v545 = vmul.f32 %v433, %v510
        %v546 = vmul.f32 %v434, %v510
        %v547 = vmul.f32 %v435, %v515
        %v548 = vmul.f32 %v436, %v515
        %549 = vset.pattern.permute.xlu0 1
        %550 = vperm.xlu0 %549, %v389
        %v551 = vpop.permute.xlu0 %550
        %553 = vset.pattern.permute.xlu0 1
        %554 = vperm.xlu0 %553, %v390
        %v555 = vpop.permute.xlu0 %554
        %557 = vset.pattern.permute.xlu0 1
        %558 = vperm.xlu0 %557, %v391
        %v559 = vpop.permute.xlu0 %558
        %561 = vset.pattern.permute.xlu0 1
        %562 = vperm.xlu0 %561, %v392
        %v563 = vpop.permute.xlu0 %562
        %565 = vset.pattern.permute.xlu0 1
        %566 = vperm.xlu0 %565, %v393
        %v567 = vpop.permute.xlu0 %566
        %569 = vset.pattern.permute.xlu0 1
        %570 = vperm.xlu0 %569, %v394
        %v571 = vpop.permute.xlu0 %570
        %573 = vset.pattern.permute.xlu0 1
        %574 = vperm.xlu0 %573, %v395
        %v575 = vpop.permute.xlu0 %574
        %577 = vset.pattern.permute.xlu0 1
        %578 = vperm.xlu0 %577, %v396
        %v579 = vpop.permute.xlu0 %578
        %581 = vset.pattern.permute.xlu0 1
        %582 = vperm.xlu0 %581, %v397
        %v583 = vpop.permute.xlu0 %582
        %585 = vset.pattern.permute.xlu0 1
        %586 = vperm.xlu0 %585, %v398
        %v587 = vpop.permute.xlu0 %586
        %589 = vset.pattern.permute.xlu0 1
        %590 = vperm.xlu0 %589, %v399
        %v591 = vpop.permute.xlu0 %590
        %593 = vset.pattern.permute.xlu0 1
        %594 = vperm.xlu0 %593, %v400
        %v595 = vpop.permute.xlu0 %594
        %597 = vset.pattern.permute.xlu0 1
        %598 = vperm.xlu0 %597, %v401
        %v599 = vpop.permute.xlu0 %598
        %601 = vset.pattern.permute.xlu0 1
        %602 = vperm.xlu0 %601, %v402
        %v603 = vpop.permute.xlu0 %602
        %605 = vset.pattern.permute.xlu0 1
        %606 = vperm.xlu0 %605, %v403
        %v607 = vpop.permute.xlu0 %606
        %609 = vset.pattern.permute.xlu0 1
        %610 = vperm.xlu0 %609, %v404
        %v611 = vpop.permute.xlu0 %610
        %v613 = vadd.f32 %v517, %v551
        %v614 = vadd.f32 %v518, %v551
        %v615 = vadd.f32 %v519, %v555
        %v616 = vadd.f32 %v520, %v555
        %v617 = vadd.f32 %v521, %v559
        %v618 = vadd.f32 %v522, %v559
        %v619 = vadd.f32 %v523, %v563
        %v620 = vadd.f32 %v524, %v563
        %v621 = vadd.f32 %v525, %v567
        %v622 = vadd.f32 %v526, %v567
        %v623 = vadd.f32 %v527, %v571
        %v624 = vadd.f32 %v528, %v571
        %v625 = vadd.f32 %v529, %v575
        %v626 = vadd.f32 %v530, %v575
        %v627 = vadd.f32 %v531, %v579
        %v628 = vadd.f32 %v532, %v579
        %v629 = vadd.f32 %v533, %v583
        %v630 = vadd.f32 %v534, %v583
        %v631 = vadd.f32 %v535, %v587
        %v632 = vadd.f32 %v536, %v587
        %v633 = vadd.f32 %v537, %v591
        %v634 = vadd.f32 %v538, %v591
        %v635 = vadd.f32 %v539, %v595
        %v636 = vadd.f32 %v540, %v595
        %v637 = vadd.f32 %v541, %v599
        %v638 = vadd.f32 %v542, %v599
        %v639 = vadd.f32 %v543, %v603
        %v640 = vadd.f32 %v544, %v603
        %v641 = vadd.f32 %v545, %v607
        %v642 = vadd.f32 %v546, %v607
        %v643 = vadd.f32 %v547, %v611
        %v644 = vadd.f32 %v548, %v611
        %v645 = vpack.c.bf16 %v615, %v613
        %v646 = vpack.c.bf16 %v616, %v614
        %v647 = vpack.c.bf16 %v619, %v617
        %v648 = vpack.c.bf16 %v620, %v618
        %v649 = vpack.c.bf16 %v623, %v621
        %v650 = vpack.c.bf16 %v624, %v622
        %v651 = vpack.c.bf16 %v627, %v625
        %v652 = vpack.c.bf16 %v628, %v626
        %v653 = vpack.c.bf16 %v631, %v629
        %v654 = vpack.c.bf16 %v632, %v630
        %v655 = vpack.c.bf16 %v635, %v633
        %v656 = vpack.c.bf16 %v636, %v634
        %v657 = vpack.c.bf16 %v639, %v637
        %v658 = vpack.c.bf16 %v640, %v638
        %v659 = vpack.c.bf16 %v643, %v641
        %v660 = vpack.c.bf16 %v644, %v642
        %v661 = vld [vmem:[%s5] sm:$0xff]
        %v662 = vld [vmem:[%s5 + $0x8] sm:$0xff]
        %v663 = vld [vmem:[%s5 + $0x10] sm:$0xff]
        %v664 = vld [vmem:[%s5 + $0x18] sm:$0xff]
        %v665 = vld [vmem:[%s5 + $0x20] sm:$0xff]
        %v666 = vld [vmem:[%s5 + $0x28] sm:$0xff]
        %v667 = vld [vmem:[%s5 + $0x30] sm:$0xff]
        %v668 = vld [vmem:[%s5 + $0x38] sm:$0xff]
        %v669 = vld [vmem:[%s5 + $0x40] sm:$0xff]
        %v670 = vld [vmem:[%s5 + $0x48] sm:$0xff]
        %v671 = vld [vmem:[%s5 + $0x50] sm:$0xff]
        %v672 = vld [vmem:[%s5 + $0x58] sm:$0xff]
        %v673 = vld [vmem:[%s5 + $0x60] sm:$0xff]
        %v674 = vld [vmem:[%s5 + $0x68] sm:$0xff]
        %v675 = vld [vmem:[%s5 + $0x70] sm:$0xff]
        %v676 = vld [vmem:[%s5 + $0x78] sm:$0xff]
        %v677 = vld [vmem:[%s2] sm:$0xf]
        %v678 = vld [vmem:[%s2 + $0x4] sm:$0xf]
        %v679 = vld [vmem:[%s2 + $0x8] sm:$0xf]
        %v680 = vld [vmem:[%s2 + $0xc] sm:$0xf]
        %v681 = vld [vmem:[%s2 + $0x10] sm:$0xf]
        %v682 = vld [vmem:[%s2 + $0x14] sm:$0xf]
        %v683 = vld [vmem:[%s2 + $0x18] sm:$0xf]
        %v684 = vld [vmem:[%s2 + $0x1c] sm:$0xf]
        %v685 = vld [vmem:[%s2 + $0x20] sm:$0xf]
        %v686 = vld [vmem:[%s2 + $0x24] sm:$0xf]
        %v687 = vld [vmem:[%s2 + $0x28] sm:$0xf]
        %v688 = vld [vmem:[%s2 + $0x2c] sm:$0xf]
        %v689 = vld [vmem:[%s2 + $0x30] sm:$0xf]
        %v690 = vld [vmem:[%s2 + $0x34] sm:$0xf]
        %v691 = vld [vmem:[%s2 + $0x38] sm:$0xf]
        %v692 = vld [vmem:[%s2 + $0x3c] sm:$0xf]
        %694 = vset.pattern.permute.xlu0 0
        %695 = vperm.xlu0 %694, %v661
        %v696 = vpop.permute.xlu0 %695
        %699 = vset.pattern.permute.xlu0 0
        %700 = vperm.xlu0 %699, %v662
        %v701 = vpop.permute.xlu0 %700
        %704 = vset.pattern.permute.xlu0 0
        %705 = vperm.xlu0 %704, %v663
        %v706 = vpop.permute.xlu0 %705
        %709 = vset.pattern.permute.xlu0 0
        %710 = vperm.xlu0 %709, %v664
        %v711 = vpop.permute.xlu0 %710
        %714 = vset.pattern.permute.xlu0 0
        %715 = vperm.xlu0 %714, %v665
        %v716 = vpop.permute.xlu0 %715
        %719 = vset.pattern.permute.xlu0 0
        %720 = vperm.xlu0 %719, %v666
        %v721 = vpop.permute.xlu0 %720
        %724 = vset.pattern.permute.xlu0 0
        %725 = vperm.xlu0 %724, %v667
        %v726 = vpop.permute.xlu0 %725
        %729 = vset.pattern.permute.xlu0 0
        %730 = vperm.xlu0 %729, %v668
        %v731 = vpop.permute.xlu0 %730
        %734 = vset.pattern.permute.xlu0 0
        %735 = vperm.xlu0 %734, %v669
        %v736 = vpop.permute.xlu0 %735
        %739 = vset.pattern.permute.xlu0 0
        %740 = vperm.xlu0 %739, %v670
        %v741 = vpop.permute.xlu0 %740
        %744 = vset.pattern.permute.xlu0 0
        %745 = vperm.xlu0 %744, %v671
        %v746 = vpop.permute.xlu0 %745
        %749 = vset.pattern.permute.xlu0 0
        %750 = vperm.xlu0 %749, %v672
        %v751 = vpop.permute.xlu0 %750
        %754 = vset.pattern.permute.xlu0 0
        %755 = vperm.xlu0 %754, %v673
        %v756 = vpop.permute.xlu0 %755
        %759 = vset.pattern.permute.xlu0 0
        %760 = vperm.xlu0 %759, %v674
        %v761 = vpop.permute.xlu0 %760
        %764 = vset.pattern.permute.xlu0 0
        %765 = vperm.xlu0 %764, %v675
        %v766 = vpop.permute.xlu0 %765
        %769 = vset.pattern.permute.xlu0 0
        %770 = vperm.xlu0 %769, %v676
        %v771 = vpop.permute.xlu0 %770
        %v789 = vunpack.c.l.b16 %v677
        %v790 = vunpack.c.l.b16 %v678
        %v791 = vunpack.c.l.b16 %v679
        %v792 = vunpack.c.l.b16 %v680
        %v793 = vunpack.c.l.b16 %v681
        %v794 = vunpack.c.l.b16 %v682
        %v795 = vunpack.c.l.b16 %v683
        %v796 = vunpack.c.l.b16 %v684
        %v797 = vunpack.c.l.b16 %v685
        %v798 = vunpack.c.l.b16 %v686
        %v799 = vunpack.c.l.b16 %v687
        %v800 = vunpack.c.l.b16 %v688
        %v801 = vunpack.c.l.b16 %v689
        %v802 = vunpack.c.l.b16 %v690
        %v803 = vunpack.c.l.b16 %v691
        %v804 = vunpack.c.l.b16 %v692
        %v805 = vpack.c.b16 %v790, %v789
        %v806 = vpack.c.b16 %v792, %v791
        %v807 = vpack.c.b16 %v794, %v793
        %v808 = vpack.c.b16 %v796, %v795
        %v809 = vpack.c.b16 %v798, %v797
        %v810 = vpack.c.b16 %v800, %v799
        %v811 = vpack.c.b16 %v802, %v801
        %v812 = vpack.c.b16 %v804, %v803
        %821 = vmatprep.subr.bf16.mxu0 %v646
        %822 = vmatpush1.bf16.msra.mxu0 %v645
        %823 = vmatprep.subr.bf16.mxu0 %v648
        %824 = vmatpush1.bf16.msra.mxu0 %v647
        %825 = vmatprep.subr.bf16.mxu0 %v650
        %826 = vmatpush1.bf16.msra.mxu0 %v649
        %827 = vmatprep.subr.bf16.mxu0 %v652
        %828 = vmatpush1.bf16.msra.mxu0 %v651
        %829 = vmatprep.subr.bf16.mxu0 %v654
        %830 = vmatpush1.bf16.msra.mxu0 %v653
        %831 = vmatprep.subr.bf16.mxu0 %v656
        %832 = vmatpush1.bf16.msra.mxu0 %v655
        %833 = vmatprep.subr.bf16.mxu0 %v658
        %834 = vmatpush1.bf16.msra.mxu0 %v657
        %835 = vmatprep.subr.bf16.mxu0 %v660
        %836 = vmatpush1.bf16.msra.mxu0 %v659
        %837 = vmatprep.subr.bf16.mxu0 0
        %838 = vmatpush1.bf16.msra.mxu0 0
        %839 = vmatprep.subr.bf16.mxu0 0
        %840 = vmatpush1.bf16.msra.mxu0 0
        %841 = vmatprep.subr.bf16.mxu0 0
        %842 = vmatpush1.bf16.msra.mxu0 0
        %843 = vmatprep.subr.bf16.mxu0 0
        %844 = vmatpush1.bf16.msra.mxu0 0
        %845 = vmatprep.subr.bf16.mxu0 0
        %846 = vmatpush1.bf16.msra.mxu0 0
        %847 = vmatprep.subr.bf16.mxu0 0
        %848 = vmatpush1.bf16.msra.mxu0 0
        %849 = vmatprep.subr.bf16.mxu0 0
        %850 = vmatpush1.bf16.msra.mxu0 0
        %851 = vmatprep.subr.bf16.mxu0 0
        %852 = vmatpush1.bf16.msra.mxu0 0
        %853 = vmatprep.mubr.bf16.mxu0 0
        %854 = vmatmul.mubr.bf16.gmra.mrb[0].mxu0 %v805
        %v855 = vpop.f32.mrb[0].mxu0
        %v856 = vadd.f32 %v696, %v855
        %v857 = vpop.f32.mrb[0].mxu0
        %v858 = vadd.f32 %v696, %v857
        %v859 = vpop.f32.mrb[0].mxu0
        %v860 = vadd.f32 %v701, %v859
        %v861 = vpop.f32.mrb[0].mxu0
        %v862 = vadd.f32 %v701, %v861
        %863 = vmatprep.mubr.bf16.mxu0 0
        %864 = vmatmul.mubr.bf16.gmra.mrb[0].mxu0 %v806
        %v865 = vpop.f32.mrb[0].mxu0
        %v866 = vadd.f32 %v706, %v865
        %v867 = vpop.f32.mrb[0].mxu0
        %v868 = vadd.f32 %v706, %v867
        %v869 = vpop.f32.mrb[0].mxu0
        %v870 = vadd.f32 %v711, %v869
        %v871 = vpop.f32.mrb[0].mxu0
        %v872 = vadd.f32 %v711, %v871
        %873 = vmatprep.mubr.bf16.mxu0 0
        %874 = vmatmul.mubr.bf16.gmra.mrb[0].mxu0 %v807
        %v875 = vpop.f32.mrb[0].mxu0
        %v876 = vadd.f32 %v716, %v875
        %v877 = vpop.f32.mrb[0].mxu0
        %v878 = vadd.f32 %v716, %v877
        %v879 = vpop.f32.mrb[0].mxu0
        %v880 = vadd.f32 %v721, %v879
        %v881 = vpop.f32.mrb[0].mxu0
        %v882 = vadd.f32 %v721, %v881
        %883 = vmatprep.mubr.bf16.mxu0 0
        %884 = vmatmul.mubr.bf16.gmra.mrb[0].mxu0 %v808
        %v885 = vpop.f32.mrb[0].mxu0
        %v886 = vadd.f32 %v726, %v885
        %v887 = vpop.f32.mrb[0].mxu0
        %v888 = vadd.f32 %v726, %v887
        %v889 = vpop.f32.mrb[0].mxu0
        %v890 = vadd.f32 %v731, %v889
        %v891 = vpop.f32.mrb[0].mxu0
        %v892 = vadd.f32 %v731, %v891
        %893 = vmatprep.mubr.bf16.mxu0 0
        %894 = vmatmul.mubr.bf16.gmra.mrb[0].mxu0 %v809
        %v895 = vpop.f32.mrb[0].mxu0
        %v896 = vadd.f32 %v736, %v895
        %v897 = vpop.f32.mrb[0].mxu0
        %v898 = vadd.f32 %v736, %v897
        %v899 = vpop.f32.mrb[0].mxu0
        %v900 = vadd.f32 %v741, %v899
        %v901 = vpop.f32.mrb[0].mxu0
        %v902 = vadd.f32 %v741, %v901
        %903 = vmatprep.mubr.bf16.mxu0 0
        %904 = vmatmul.mubr.bf16.gmra.mrb[0].mxu0 %v810
        %v905 = vpop.f32.mrb[0].mxu0
        %v906 = vadd.f32 %v746, %v905
        %v907 = vpop.f32.mrb[0].mxu0
        %v908 = vadd.f32 %v746, %v907
        %v909 = vpop.f32.mrb[0].mxu0
        %v910 = vadd.f32 %v751, %v909
        %v911 = vpop.f32.mrb[0].mxu0
        %v912 = vadd.f32 %v751, %v911
        %913 = vmatprep.mubr.bf16.mxu0 0
        %914 = vmatmul.mubr.bf16.gmra.mrb[0].mxu0 %v811
        %v915 = vpop.f32.mrb[0].mxu0
        %v916 = vadd.f32 %v756, %v915
        %v917 = vpop.f32.mrb[0].mxu0
        %v918 = vadd.f32 %v756, %v917
        %v919 = vpop.f32.mrb[0].mxu0
        %v920 = vadd.f32 %v761, %v919
        %v921 = vpop.f32.mrb[0].mxu0
        %v922 = vadd.f32 %v761, %v921
        %923 = vmatprep.mubr.bf16.mxu0 0
        %924 = vmatmul.mubr.bf16.gmra.mrb[0].mxu0 %v812
        %v925 = vpop.f32.mrb[0].mxu0
        %v926 = vadd.f32 %v766, %v925
        %v927 = vpop.f32.mrb[0].mxu0
        %v928 = vadd.f32 %v766, %v927
        %v929 = vpop.f32.mrb[0].mxu0
        %v930 = vadd.f32 %v771, %v929
        %v931 = vpop.f32.mrb[0].mxu0
        %v932 = vadd.f32 %v771, %v931
        %933 = vdwg.mxu0
        %v934 = vld [vmem:[%s3] sm:$0xf]
        %v935 = vld [vmem:[%s3 + $0x4] sm:$0xf]
        %v936 = vld [vmem:[%s3 + $0x8] sm:$0xf]
        %v937 = vld [vmem:[%s3 + $0xc] sm:$0xf]
        %v938 = vld [vmem:[%s3 + $0x10] sm:$0xf]
        %v939 = vld [vmem:[%s3 + $0x14] sm:$0xf]
        %v940 = vld [vmem:[%s3 + $0x18] sm:$0xf]
        %v941 = vld [vmem:[%s3 + $0x1c] sm:$0xf]
        %v942 = vld [vmem:[%s3 + $0x20] sm:$0xf]
        %v943 = vld [vmem:[%s3 + $0x24] sm:$0xf]
        %v944 = vld [vmem:[%s3 + $0x28] sm:$0xf]
        %v945 = vld [vmem:[%s3 + $0x2c] sm:$0xf]
        %v946 = vld [vmem:[%s3 + $0x30] sm:$0xf]
        %v947 = vld [vmem:[%s3 + $0x34] sm:$0xf]
        %v948 = vld [vmem:[%s3 + $0x38] sm:$0xf]
        %v949 = vld [vmem:[%s3 + $0x3c] sm:$0xf]
        %950 = vset.pattern.permute.xlu0 1
        %951 = vperm.xlu0 %950, %v661
        %v952 = vpop.permute.xlu0 %951
        %954 = vset.pattern.permute.xlu0 1
        %955 = vperm.xlu0 %954, %v662
        %v956 = vpop.permute.xlu0 %955
        %958 = vset.pattern.permute.xlu0 1
        %959 = vperm.xlu0 %958, %v663
        %v960 = vpop.permute.xlu0 %959
        %962 = vset.pattern.permute.xlu0 1
        %963 = vperm.xlu0 %962, %v664
        %v964 = vpop.permute.xlu0 %963
        %966 = vset.pattern.permute.xlu0 1
        %967 = vperm.xlu0 %966, %v665
        %v968 = vpop.permute.xlu0 %967
        %970 = vset.pattern.permute.xlu0 1
        %971 = vperm.xlu0 %970, %v666
        %v972 = vpop.permute.xlu0 %971
        %974 = vset.pattern.permute.xlu0 1
        %975 = vperm.xlu0 %974, %v667
        %v976 = vpop.permute.xlu0 %975
        %978 = vset.pattern.permute.xlu0 1
        %979 = vperm.xlu0 %978, %v668
        %v980 = vpop.permute.xlu0 %979
        %982 = vset.pattern.permute.xlu0 1
        %983 = vperm.xlu0 %982, %v669
        %v984 = vpop.permute.xlu0 %983
        %986 = vset.pattern.permute.xlu0 1
        %987 = vperm.xlu0 %986, %v670
        %v988 = vpop.permute.xlu0 %987
        %990 = vset.pattern.permute.xlu0 1
        %991 = vperm.xlu0 %990, %v671
        %v992 = vpop.permute.xlu0 %991
        %994 = vset.pattern.permute.xlu0 1
        %995 = vperm.xlu0 %994, %v672
        %v996 = vpop.permute.xlu0 %995
        %998 = vset.pattern.permute.xlu0 1
        %999 = vperm.xlu0 %998, %v673
        %v1000 = vpop.permute.xlu0 %999
        %1002 = vset.pattern.permute.xlu0 1
        %1003 = vperm.xlu0 %1002, %v674
        %v1004 = vpop.permute.xlu0 %1003
        %1006 = vset.pattern.permute.xlu0 1
        %1007 = vperm.xlu0 %1006, %v675
        %v1008 = vpop.permute.xlu0 %1007
        %1010 = vset.pattern.permute.xlu0 1
        %1011 = vperm.xlu0 %1010, %v676
        %v1012 = vpop.permute.xlu0 %1011
        %v1030 = vunpack.c.l.b16 %v934
        %v1031 = vunpack.c.l.b16 %v935
        %v1032 = vunpack.c.l.b16 %v936
        %v1033 = vunpack.c.l.b16 %v937
        %v1034 = vunpack.c.l.b16 %v938
        %v1035 = vunpack.c.l.b16 %v939
        %v1036 = vunpack.c.l.b16 %v940
        %v1037 = vunpack.c.l.b16 %v941
        %v1038 = vunpack.c.l.b16 %v942
        %v1039 = vunpack.c.l.b16 %v943
        %v1040 = vunpack.c.l.b16 %v944
        %v1041 = vunpack.c.l.b16 %v945
        %v1042 = vunpack.c.l.b16 %v946
        %v1043 = vunpack.c.l.b16 %v947
        %v1044 = vunpack.c.l.b16 %v948
        %v1045 = vunpack.c.l.b16 %v949
        %v1046 = vpack.c.b16 %v1031, %v1030
        %v1047 = vpack.c.b16 %v1033, %v1032
        %v1048 = vpack.c.b16 %v1035, %v1034
        %v1049 = vpack.c.b16 %v1037, %v1036
        %v1050 = vpack.c.b16 %v1039, %v1038
        %v1051 = vpack.c.b16 %v1041, %v1040
        %v1052 = vpack.c.b16 %v1043, %v1042
        %v1053 = vpack.c.b16 %v1045, %v1044
        %1062 = vmatprep.subr.bf16.mxu0 %v646
        %1063 = vmatpush1.bf16.msra.mxu0 %v645
        %1064 = vmatprep.subr.bf16.mxu0 %v648
        %1065 = vmatpush1.bf16.msra.mxu0 %v647
        %1066 = vmatprep.subr.bf16.mxu0 %v650
        %1067 = vmatpush1.bf16.msra.mxu0 %v649
        %1068 = vmatprep.subr.bf16.mxu0 %v652
        %1069 = vmatpush1.bf16.msra.mxu0 %v651
        %1070 = vmatprep.subr.bf16.mxu0 %v654
        %1071 = vmatpush1.bf16.msra.mxu0 %v653
        %1072 = vmatprep.subr.bf16.mxu0 %v656
        %1073 = vmatpush1.bf16.msra.mxu0 %v655
        %1074 = vmatprep.subr.bf16.mxu0 %v658
        %1075 = vmatpush1.bf16.msra.mxu0 %v657
        %1076 = vmatprep.subr.bf16.mxu0 %v660
        %1077 = vmatpush1.bf16.msra.mxu0 %v659
        %1078 = vmatprep.subr.bf16.mxu0 0
        %1079 = vmatpush1.bf16.msra.mxu0 0
        %1080 = vmatprep.subr.bf16.mxu0 0
        %1081 = vmatpush1.bf16.msra.mxu0 0
        %1082 = vmatprep.subr.bf16.mxu0 0
        %1083 = vmatpush1.bf16.msra.mxu0 0
        %1084 = vmatprep.subr.bf16.mxu0 0
        %1085 = vmatpush1.bf16.msra.mxu0 0
        %1086 = vmatprep.subr.bf16.mxu0 0
        %1087 = vmatpush1.bf16.msra.mxu0 0
        %1088 = vmatprep.subr.bf16.mxu0 0
        %1089 = vmatpush1.bf16.msra.mxu0 0
        %1090 = vmatprep.subr.bf16.mxu0 0
        %1091 = vmatpush1.bf16.msra.mxu0 0
        %1092 = vmatprep.subr.bf16.mxu0 0
        %1093 = vmatpush1.bf16.msra.mxu0 0
        %1094 = vmatprep.mubr.bf16.mxu0 0
        %1095 = vmatmul.mubr.bf16.gmra.mrb[0].mxu0 %v1046
        %v1096 = vpop.f32.mrb[0].mxu0
        %v1097 = vadd.f32 %v952, %v1096
        %v1098 = vpop.f32.mrb[0].mxu0
        %v1099 = vadd.f32 %v952, %v1098
        %v1100 = vpop.f32.mrb[0].mxu0
        %v1101 = vadd.f32 %v956, %v1100
        %v1102 = vpop.f32.mrb[0].mxu0
        %v1103 = vadd.f32 %v956, %v1102
        %1104 = vmatprep.mubr.bf16.mxu0 0
        %1105 = vmatmul.mubr.bf16.gmra.mrb[0].mxu0 %v1047
        %v1106 = vpop.f32.mrb[0].mxu0
        %v1107 = vadd.f32 %v960, %v1106
        %v1108 = vpop.f32.mrb[0].mxu0
        %v1109 = vadd.f32 %v960, %v1108
        %v1110 = vpop.f32.mrb[0].mxu0
        %v1111 = vadd.f32 %v964, %v1110
        %v1112 = vpop.f32.mrb[0].mxu0
        %v1113 = vadd.f32 %v964, %v1112
        %1114 = vmatprep.mubr.bf16.mxu0 0
        %1115 = vmatmul.mubr.bf16.gmra.mrb[0].mxu0 %v1048
        %v1116 = vpop.f32.mrb[0].mxu0
        %v1117 = vadd.f32 %v968, %v1116
        %v1118 = vpop.f32.mrb[0].mxu0
        %v1119 = vadd.f32 %v968, %v1118
        %v1120 = vpop.f32.mrb[0].mxu0
        %v1121 = vadd.f32 %v972, %v1120
        %v1122 = vpop.f32.mrb[0].mxu0
        %v1123 = vadd.f32 %v972, %v1122
        %1124 = vmatprep.mubr.bf16.mxu0 0
        %1125 = vmatmul.mubr.bf16.gmra.mrb[0].mxu0 %v1049
        %v1126 = vpop.f32.mrb[0].mxu0
        %v1127 = vadd.f32 %v976, %v1126
        %v1128 = vpop.f32.mrb[0].mxu0
        %v1129 = vadd.f32 %v976, %v1128
        %v1130 = vpop.f32.mrb[0].mxu0
        %v1131 = vadd.f32 %v980, %v1130
        %v1132 = vpop.f32.mrb[0].mxu0
        %v1133 = vadd.f32 %v980, %v1132
        %1134 = vmatprep.mubr.bf16.mxu0 0
        %1135 = vmatmul.mubr.bf16.gmra.mrb[0].mxu0 %v1050
        %v1136 = vpop.f32.mrb[0].mxu0
        %v1137 = vadd.f32 %v984, %v1136
        %v1138 = vpop.f32.mrb[0].mxu0
        %v1139 = vadd.f32 %v984, %v1138
        %v1140 = vpop.f32.mrb[0].mxu0
        %v1141 = vadd.f32 %v988, %v1140
        %v1142 = vpop.f32.mrb[0].mxu0
        %v1143 = vadd.f32 %v988, %v1142
        %1144 = vmatprep.mubr.bf16.mxu0 0
        %1145 = vmatmul.mubr.bf16.gmra.mrb[0].mxu0 %v1051
        %v1146 = vpop.f32.mrb[0].mxu0
        %v1147 = vadd.f32 %v992, %v1146
        %v1148 = vpop.f32.mrb[0].mxu0
        %v1149 = vadd.f32 %v992, %v1148
        %v1150 = vpop.f32.mrb[0].mxu0
        %v1151 = vadd.f32 %v996, %v1150
        %v1152 = vpop.f32.mrb[0].mxu0
        %v1153 = vadd.f32 %v996, %v1152
        %1154 = vmatprep.mubr.bf16.mxu0 0
        %1155 = vmatmul.mubr.bf16.gmra.mrb[0].mxu0 %v1052
        %v1156 = vpop.f32.mrb[0].mxu0
        %v1157 = vadd.f32 %v1000, %v1156
        %v1158 = vpop.f32.mrb[0].mxu0
        %v1159 = vadd.f32 %v1000, %v1158
        %v1160 = vpop.f32.mrb[0].mxu0
        %v1161 = vadd.f32 %v1004, %v1160
        %v1162 = vpop.f32.mrb[0].mxu0
        %v1163 = vadd.f32 %v1004, %v1162
        %1164 = vmatprep.mubr.bf16.mxu0 0
        %1165 = vmatmul.mubr.bf16.gmra.mrb[0].mxu0 %v1053
        %v1166 = vpop.f32.mrb[0].mxu0
        %v1167 = vadd.f32 %v1008, %v1166
        %v1168 = vpop.f32.mrb[0].mxu0
        %v1169 = vadd.f32 %v1008, %v1168
        %v1170 = vpop.f32.mrb[0].mxu0
        %v1171 = vadd.f32 %v1012, %v1170
        %v1172 = vpop.f32.mrb[0].mxu0
        %v1173 = vadd.f32 %v1012, %v1172
        %1174 = vdwg.mxu0
        %v1175 = vld [vmem:[%s4] sm:$0xf]
        %v1176 = vld [vmem:[%s4 + $0x4] sm:$0xf]
        %v1177 = vld [vmem:[%s4 + $0x8] sm:$0xf]
        %v1178 = vld [vmem:[%s4 + $0xc] sm:$0xf]
        %v1179 = vld [vmem:[%s4 + $0x10] sm:$0xf]
        %v1180 = vld [vmem:[%s4 + $0x14] sm:$0xf]
        %v1181 = vld [vmem:[%s4 + $0x18] sm:$0xf]
        %v1182 = vld [vmem:[%s4 + $0x1c] sm:$0xf]
        %v1183 = vld [vmem:[%s4 + $0x20] sm:$0xf]
        %v1184 = vld [vmem:[%s4 + $0x24] sm:$0xf]
        %v1185 = vld [vmem:[%s4 + $0x28] sm:$0xf]
        %v1186 = vld [vmem:[%s4 + $0x2c] sm:$0xf]
        %v1187 = vld [vmem:[%s4 + $0x30] sm:$0xf]
        %v1188 = vld [vmem:[%s4 + $0x34] sm:$0xf]
        %v1189 = vld [vmem:[%s4 + $0x38] sm:$0xf]
        %v1190 = vld [vmem:[%s4 + $0x3c] sm:$0xf]
        %1191 = vset.pattern.permute.xlu0 2
        %1192 = vperm.xlu0 %1191, %v661
        %v1193 = vpop.permute.xlu0 %1192
        %1195 = vset.pattern.permute.xlu0 2
        %1196 = vperm.xlu0 %1195, %v662
        %v1197 = vpop.permute.xlu0 %1196
        %1199 = vset.pattern.permute.xlu0 2
        %1200 = vperm.xlu0 %1199, %v663
        %v1201 = vpop.permute.xlu0 %1200
        %1203 = vset.pattern.permute.xlu0 2
        %1204 = vperm.xlu0 %1203, %v664
        %v1205 = vpop.permute.xlu0 %1204
        %1207 = vset.pattern.permute.xlu0 2
        %1208 = vperm.xlu0 %1207, %v665
        %v1209 = vpop.permute.xlu0 %1208
        %1211 = vset.pattern.permute.xlu0 2
        %1212 = vperm.xlu0 %1211, %v666
        %v1213 = vpop.permute.xlu0 %1212
        %1215 = vset.pattern.permute.xlu0 2
        %1216 = vperm.xlu0 %1215, %v667
        %v1217 = vpop.permute.xlu0 %1216
        %1219 = vset.pattern.permute.xlu0 2
        %1220 = vperm.xlu0 %1219, %v668
        %v1221 = vpop.permute.xlu0 %1220
        %1223 = vset.pattern.permute.xlu0 2
        %1224 = vperm.xlu0 %1223, %v669
        %v1225 = vpop.permute.xlu0 %1224
        %1227 = vset.pattern.permute.xlu0 2
        %1228 = vperm.xlu0 %1227, %v670
        %v1229 = vpop.permute.xlu0 %1228
        %1231 = vset.pattern.permute.xlu0 2
        %1232 = vperm.xlu0 %1231, %v671
        %v1233 = vpop.permute.xlu0 %1232
        %1235 = vset.pattern.permute.xlu0 2
        %1236 = vperm.xlu0 %1235, %v672
        %v1237 = vpop.permute.xlu0 %1236
        %1239 = vset.pattern.permute.xlu0 2
        %1240 = vperm.xlu0 %1239, %v673
        %v1241 = vpop.permute.xlu0 %1240
        %1243 = vset.pattern.permute.xlu0 2
        %1244 = vperm.xlu0 %1243, %v674
        %v1245 = vpop.permute.xlu0 %1244
        %1247 = vset.pattern.permute.xlu0 2
        %1248 = vperm.xlu0 %1247, %v675
        %v1249 = vpop.permute.xlu0 %1248
        %1251 = vset.pattern.permute.xlu0 2
        %1252 = vperm.xlu0 %1251, %v676
        %v1253 = vpop.permute.xlu0 %1252
        %v1271 = vunpack.c.l.b16 %v1175
        %v1272 = vunpack.c.l.b16 %v1176
        %v1273 = vunpack.c.l.b16 %v1177
        %v1274 = vunpack.c.l.b16 %v1178
        %v1275 = vunpack.c.l.b16 %v1179
        %v1276 = vunpack.c.l.b16 %v1180
        %v1277 = vunpack.c.l.b16 %v1181
        %v1278 = vunpack.c.l.b16 %v1182
        %v1279 = vunpack.c.l.b16 %v1183
        %v1280 = vunpack.c.l.b16 %v1184
        %v1281 = vunpack.c.l.b16 %v1185
        %v1282 = vunpack.c.l.b16 %v1186
        %v1283 = vunpack.c.l.b16 %v1187
        %v1284 = vunpack.c.l.b16 %v1188
        %v1285 = vunpack.c.l.b16 %v1189
        %v1286 = vunpack.c.l.b16 %v1190
        %v1287 = vpack.c.b16 %v1272, %v1271
        %v1288 = vpack.c.b16 %v1274, %v1273
        %v1289 = vpack.c.b16 %v1276, %v1275
        %v1290 = vpack.c.b16 %v1278, %v1277
        %v1291 = vpack.c.b16 %v1280, %v1279
        %v1292 = vpack.c.b16 %v1282, %v1281
        %v1293 = vpack.c.b16 %v1284, %v1283
        %v1294 = vpack.c.b16 %v1286, %v1285
        %1303 = vmatprep.subr.bf16.mxu0 %v646
        %1304 = vmatpush1.bf16.msra.mxu0 %v645
        %1305 = vmatprep.subr.bf16.mxu0 %v648
        %1306 = vmatpush1.bf16.msra.mxu0 %v647
        %1307 = vmatprep.subr.bf16.mxu0 %v650
        %1308 = vmatpush1.bf16.msra.mxu0 %v649
        %1309 = vmatprep.subr.bf16.mxu0 %v652
        %1310 = vmatpush1.bf16.msra.mxu0 %v651
        %1311 = vmatprep.subr.bf16.mxu0 %v654
        %1312 = vmatpush1.bf16.msra.mxu0 %v653
        %1313 = vmatprep.subr.bf16.mxu0 %v656
        %1314 = vmatpush1.bf16.msra.mxu0 %v655
        %1315 = vmatprep.subr.bf16.mxu0 %v658
        %1316 = vmatpush1.bf16.msra.mxu0 %v657
        %1317 = vmatprep.subr.bf16.mxu0 %v660
        %1318 = vmatpush1.bf16.msra.mxu0 %v659
        %1319 = vmatprep.subr.bf16.mxu0 0
        %1320 = vmatpush1.bf16.msra.mxu0 0
        %1321 = vmatprep.subr.bf16.mxu0 0
        %1322 = vmatpush1.bf16.msra.mxu0 0
        %1323 = vmatprep.subr.bf16.mxu0 0
        %1324 = vmatpush1.bf16.msra.mxu0 0
        %1325 = vmatprep.subr.bf16.mxu0 0
        %1326 = vmatpush1.bf16.msra.mxu0 0
        %1327 = vmatprep.subr.bf16.mxu0 0
        %1328 = vmatpush1.bf16.msra.mxu0 0
        %1329 = vmatprep.subr.bf16.mxu0 0
        %1330 = vmatpush1.bf16.msra.mxu0 0
        %1331 = vmatprep.subr.bf16.mxu0 0
        %1332 = vmatpush1.bf16.msra.mxu0 0
        %1333 = vmatprep.subr.bf16.mxu0 0
        %1334 = vmatpush1.bf16.msra.mxu0 0
        %1335 = vmatprep.mubr.bf16.mxu0 0
        %1336 = vmatmul.mubr.bf16.gmra.mrb[0].mxu0 %v1287
        %v1337 = vpop.f32.mrb[0].mxu0
        %v1338 = vadd.f32 %v1193, %v1337
        %v1339 = vpop.f32.mrb[0].mxu0
        %v1340 = vadd.f32 %v1193, %v1339
        %v1341 = vpop.f32.mrb[0].mxu0
        %v1342 = vadd.f32 %v1197, %v1341
        %v1343 = vpop.f32.mrb[0].mxu0
        %v1344 = vadd.f32 %v1197, %v1343
        %1345 = vmatprep.mubr.bf16.mxu0 0
        %1346 = vmatmul.mubr.bf16.gmra.mrb[0].mxu0 %v1288
        %v1347 = vpop.f32.mrb[0].mxu0
        %v1348 = vadd.f32 %v1201, %v1347
        %v1349 = vpop.f32.mrb[0].mxu0
        %v1350 = vadd.f32 %v1201, %v1349
        %v1351 = vpop.f32.mrb[0].mxu0
        %v1352 = vadd.f32 %v1205, %v1351
        %v1353 = vpop.f32.mrb[0].mxu0
        %v1354 = vadd.f32 %v1205, %v1353
        %1355 = vmatprep.mubr.bf16.mxu0 0
        %1356 = vmatmul.mubr.bf16.gmra.mrb[0].mxu0 %v1289
        %v1357 = vpop.f32.mrb[0].mxu0
        %v1358 = vadd.f32 %v1209, %v1357
        %v1359 = vpop.f32.mrb[0].mxu0
        %v1360 = vadd.f32 %v1209, %v1359
        %v1361 = vpop.f32.mrb[0].mxu0
        %v1362 = vadd.f32 %v1213, %v1361
        %v1363 = vpop.f32.mrb[0].mxu0
        %v1364 = vadd.f32 %v1213, %v1363
        %1365 = vmatprep.mubr.bf16.mxu0 0
        %1366 = vmatmul.mubr.bf16.gmra.mrb[0].mxu0 %v1290
        %v1367 = vpop.f32.mrb[0].mxu0
        %v1368 = vadd.f32 %v1217, %v1367
        %v1369 = vpop.f32.mrb[0].mxu0
        %v1370 = vadd.f32 %v1217, %v1369
        %v1371 = vpop.f32.mrb[0].mxu0
        %v1372 = vadd.f32 %v1221, %v1371
        %v1373 = vpop.f32.mrb[0].mxu0
        %v1374 = vadd.f32 %v1221, %v1373
        %1375 = vmatprep.mubr.bf16.mxu0 0
        %1376 = vmatmul.mubr.bf16.gmra.mrb[0].mxu0 %v1291
        %v1377 = vpop.f32.mrb[0].mxu0
        %v1378 = vadd.f32 %v1225, %v1377
        %v1379 = vpop.f32.mrb[0].mxu0
        %v1380 = vadd.f32 %v1225, %v1379
        %v1381 = vpop.f32.mrb[0].mxu0
        %v1382 = vadd.f32 %v1229, %v1381
        %v1383 = vpop.f32.mrb[0].mxu0
        %v1384 = vadd.f32 %v1229, %v1383
        %1385 = vmatprep.mubr.bf16.mxu0 0
        %1386 = vmatmul.mubr.bf16.gmra.mrb[0].mxu0 %v1292
        %v1387 = vpop.f32.mrb[0].mxu0
        %v1388 = vadd.f32 %v1233, %v1387
        %v1389 = vpop.f32.mrb[0].mxu0
        %v1390 = vadd.f32 %v1233, %v1389
        %v1391 = vpop.f32.mrb[0].mxu0
        %v1392 = vadd.f32 %v1237, %v1391
        %v1393 = vpop.f32.mrb[0].mxu0
        %v1394 = vadd.f32 %v1237, %v1393
        %1395 = vmatprep.mubr.bf16.mxu0 0
        %1396 = vmatmul.mubr.bf16.gmra.mrb[0].mxu0 %v1293
        %v1397 = vpop.f32.mrb[0].mxu0
        %v1398 = vadd.f32 %v1241, %v1397
        %v1399 = vpop.f32.mrb[0].mxu0
        %v1400 = vadd.f32 %v1241, %v1399
        %v1401 = vpop.f32.mrb[0].mxu0
        %v1402 = vadd.f32 %v1245, %v1401
        %v1403 = vpop.f32.mrb[0].mxu0
        %v1404 = vadd.f32 %v1245, %v1403
        %1405 = vmatprep.mubr.bf16.mxu0 0
        %1406 = vmatmul.mubr.bf16.gmra.mrb[0].mxu0 %v1294
        %v1407 = vpop.f32.mrb[0].mxu0
        %v1408 = vadd.f32 %v1249, %v1407
        %v1409 = vpop.f32.mrb[0].mxu0
        %v1410 = vadd.f32 %v1249, %v1409
        %v1411 = vpop.f32.mrb[0].mxu0
        %v1412 = vadd.f32 %v1253, %v1411
        %v1413 = vpop.f32.mrb[0].mxu0
        %v1414 = vadd.f32 %v1253, %v1413
        %1415 = vdwg.mxu0
        %v1416 = vpack.c.bf16 %v860, %v856
        %v1417 = vpack.c.bf16 %v862, %v858
        %v1418 = vpack.c.bf16 %v870, %v866
        %v1419 = vpack.c.bf16 %v872, %v868
        %v1420 = vpack.c.bf16 %v880, %v876
        %v1421 = vpack.c.bf16 %v882, %v878
        %v1422 = vpack.c.bf16 %v890, %v886
        %v1423 = vpack.c.bf16 %v892, %v888
        %v1424 = vpack.c.bf16 %v900, %v896
        %v1425 = vpack.c.bf16 %v902, %v898
        %v1426 = vpack.c.bf16 %v910, %v906
        %v1427 = vpack.c.bf16 %v912, %v908
        %v1428 = vpack.c.bf16 %v920, %v916
        %v1429 = vpack.c.bf16 %v922, %v918
        %v1430 = vpack.c.bf16 %v930, %v926
        %v1431 = vpack.c.bf16 %v932, %v928
        %v1448 = vunpack.c.l.b16 %v1416
        %v1449 = vunpack.c.l.b16 %v1417
        %v1450 = vunpack.c.h.b16 %v1416
        %v1451 = vunpack.c.h.b16 %v1417
        %v1452 = vunpack.c.l.b16 %v1418
        %v1453 = vunpack.c.l.b16 %v1419
        %v1454 = vunpack.c.h.b16 %v1418
        %v1455 = vunpack.c.h.b16 %v1419
        %v1456 = vunpack.c.l.b16 %v1420
        %v1457 = vunpack.c.l.b16 %v1421
        %v1458 = vunpack.c.h.b16 %v1420
        %v1459 = vunpack.c.h.b16 %v1421
        %v1460 = vunpack.c.l.b16 %v1422
        %v1461 = vunpack.c.l.b16 %v1423
        %v1462 = vunpack.c.h.b16 %v1422
        %v1463 = vunpack.c.h.b16 %v1423
        %v1464 = vunpack.c.l.b16 %v1424
        %v1465 = vunpack.c.l.b16 %v1425
        %v1466 = vunpack.c.h.b16 %v1424
        %v1467 = vunpack.c.h.b16 %v1425
        %v1468 = vunpack.c.l.b16 %v1426
        %v1469 = vunpack.c.l.b16 %v1427
        %v1470 = vunpack.c.h.b16 %v1426
        %v1471 = vunpack.c.h.b16 %v1427
        %v1472 = vunpack.c.l.b16 %v1428
        %v1473 = vunpack.c.l.b16 %v1429
        %v1474 = vunpack.c.h.b16 %v1428
        %v1475 = vunpack.c.h.b16 %v1429
        %v1476 = vunpack.c.l.b16 %v1430
        %v1477 = vunpack.c.l.b16 %v1431
        %v1478 = vunpack.c.h.b16 %v1430
        %v1479 = vunpack.c.h.b16 %v1431
        %v1480 = vpack.c.b16 %v1449, %v1448
        %v1481 = vpack.c.b16 %v1451, %v1450
        %v1482 = vpack.c.b16 %v1453, %v1452
        %v1483 = vpack.c.b16 %v1455, %v1454
        %v1484 = vpack.c.b16 %v1457, %v1456
        %v1485 = vpack.c.b16 %v1459, %v1458
        %v1486 = vpack.c.b16 %v1461, %v1460
        %v1487 = vpack.c.b16 %v1463, %v1462
        %v1488 = vpack.c.b16 %v1465, %v1464
        %v1489 = vpack.c.b16 %v1467, %v1466
        %v1490 = vpack.c.b16 %v1469, %v1468
        %v1491 = vpack.c.b16 %v1471, %v1470
        %v1492 = vpack.c.b16 %v1473, %v1472
        %v1493 = vpack.c.b16 %v1475, %v1474
        %v1494 = vpack.c.b16 %v1477, %v1476
        %v1495 = vpack.c.b16 %v1479, %v1478
        %1512 = vst [vmem:[%s364] sm:$0xff] %v1480
        %1513 = vst [vmem:[%s364 + $0x8] sm:$0xff] %v1481
        %1514 = vst [vmem:[%s364 + $0x10] sm:$0xff] %v1482
        %1515 = vst [vmem:[%s364 + $0x18] sm:$0xff] %v1483
        %1516 = vst [vmem:[%s364 + $0x20] sm:$0xff] %v1484
        %1517 = vst [vmem:[%s364 + $0x28] sm:$0xff] %v1485
        %1518 = vst [vmem:[%s364 + $0x30] sm:$0xff] %v1486
        %1519 = vst [vmem:[%s364 + $0x38] sm:$0xff] %v1487
        %1520 = vst [vmem:[%s364 + $0x40] sm:$0xff] %v1488
        %1521 = vst [vmem:[%s364 + $0x48] sm:$0xff] %v1489
        %1522 = vst [vmem:[%s364 + $0x50] sm:$0xff] %v1490
        %1523 = vst [vmem:[%s364 + $0x58] sm:$0xff] %v1491
        %1524 = vst [vmem:[%s364 + $0x60] sm:$0xff] %v1492
        %1525 = vst [vmem:[%s364 + $0x68] sm:$0xff] %v1493
        %1526 = vst [vmem:[%s364 + $0x70] sm:$0xff] %v1494
        %1527 = vst [vmem:[%s364 + $0x78] sm:$0xff] %v1495
        %v1528 = vpack.c.bf16 %v1101, %v1097
        %v1529 = vpack.c.bf16 %v1103, %v1099
        %v1530 = vpack.c.bf16 %v1111, %v1107
        %v1531 = vpack.c.bf16 %v1113, %v1109
        %v1532 = vpack.c.bf16 %v1121, %v1117
        %v1533 = vpack.c.bf16 %v1123, %v1119
        %v1534 = vpack.c.bf16 %v1131, %v1127
        %v1535 = vpack.c.bf16 %v1133, %v1129
        %v1536 = vpack.c.bf16 %v1141, %v1137
        %v1537 = vpack.c.bf16 %v1143, %v1139
        %v1538 = vpack.c.bf16 %v1151, %v1147
        %v1539 = vpack.c.bf16 %v1153, %v1149
        %v1540 = vpack.c.bf16 %v1161, %v1157
        %v1541 = vpack.c.bf16 %v1163, %v1159
        %v1542 = vpack.c.bf16 %v1171, %v1167
        %v1543 = vpack.c.bf16 %v1173, %v1169
        %v1560 = vunpack.c.l.b16 %v1528
        %v1561 = vunpack.c.l.b16 %v1529
        %v1562 = vunpack.c.h.b16 %v1528
        %v1563 = vunpack.c.h.b16 %v1529
        %v1564 = vunpack.c.l.b16 %v1530
        %v1565 = vunpack.c.l.b16 %v1531
        %v1566 = vunpack.c.h.b16 %v1530
        %v1567 = vunpack.c.h.b16 %v1531
        %v1568 = vunpack.c.l.b16 %v1532
        %v1569 = vunpack.c.l.b16 %v1533
        %v1570 = vunpack.c.h.b16 %v1532
        %v1571 = vunpack.c.h.b16 %v1533
        %v1572 = vunpack.c.l.b16 %v1534
        %v1573 = vunpack.c.l.b16 %v1535
        %v1574 = vunpack.c.h.b16 %v1534
        %v1575 = vunpack.c.h.b16 %v1535
        %v1576 = vunpack.c.l.b16 %v1536
        %v1577 = vunpack.c.l.b16 %v1537
        %v1578 = vunpack.c.h.b16 %v1536
        %v1579 = vunpack.c.h.b16 %v1537
        %v1580 = vunpack.c.l.b16 %v1538
        %v1581 = vunpack.c.l.b16 %v1539
        %v1582 = vunpack.c.h.b16 %v1538
        %v1583 = vunpack.c.h.b16 %v1539
        %v1584 = vunpack.c.l.b16 %v1540
        %v1585 = vunpack.c.l.b16 %v1541
        %v1586 = vunpack.c.h.b16 %v1540
        %v1587 = vunpack.c.h.b16 %v1541
        %v1588 = vunpack.c.l.b16 %v1542
        %v1589 = vunpack.c.l.b16 %v1543
        %v1590 = vunpack.c.h.b16 %v1542
        %v1591 = vunpack.c.h.b16 %v1543
        %v1592 = vpack.c.b16 %v1561, %v1560
        %v1593 = vpack.c.b16 %v1563, %v1562
        %v1594 = vpack.c.b16 %v1565, %v1564
        %v1595 = vpack.c.b16 %v1567, %v1566
        %v1596 = vpack.c.b16 %v1569, %v1568
        %v1597 = vpack.c.b16 %v1571, %v1570
        %v1598 = vpack.c.b16 %v1573, %v1572
        %v1599 = vpack.c.b16 %v1575, %v1574
        %v1600 = vpack.c.b16 %v1577, %v1576
        %v1601 = vpack.c.b16 %v1579, %v1578
        %v1602 = vpack.c.b16 %v1581, %v1580
        %v1603 = vpack.c.b16 %v1583, %v1582
        %v1604 = vpack.c.b16 %v1585, %v1584
        %v1605 = vpack.c.b16 %v1587, %v1586
        %v1606 = vpack.c.b16 %v1589, %v1588
        %v1607 = vpack.c.b16 %v1591, %v1590
        %1624 = vst [vmem:[%s371] sm:$0xff] %v1592
        %1625 = vst [vmem:[%s371 + $0x8] sm:$0xff] %v1593
        %1626 = vst [vmem:[%s371 + $0x10] sm:$0xff] %v1594
        %1627 = vst [vmem:[%s371 + $0x18] sm:$0xff] %v1595
        %1628 = vst [vmem:[%s371 + $0x20] sm:$0xff] %v1596
        %1629 = vst [vmem:[%s371 + $0x28] sm:$0xff] %v1597
        %1630 = vst [vmem:[%s371 + $0x30] sm:$0xff] %v1598
        %1631 = vst [vmem:[%s371 + $0x38] sm:$0xff] %v1599
        %1632 = vst [vmem:[%s371 + $0x40] sm:$0xff] %v1600
        %1633 = vst [vmem:[%s371 + $0x48] sm:$0xff] %v1601
        %1634 = vst [vmem:[%s371 + $0x50] sm:$0xff] %v1602
        %1635 = vst [vmem:[%s371 + $0x58] sm:$0xff] %v1603
        %1636 = vst [vmem:[%s371 + $0x60] sm:$0xff] %v1604
        %1637 = vst [vmem:[%s371 + $0x68] sm:$0xff] %v1605
        %1638 = vst [vmem:[%s371 + $0x70] sm:$0xff] %v1606
        %1639 = vst [vmem:[%s371 + $0x78] sm:$0xff] %v1607
        %v1640 = vpack.c.bf16 %v1342, %v1338
        %v1641 = vpack.c.bf16 %v1344, %v1340
        %v1642 = vpack.c.bf16 %v1352, %v1348
        %v1643 = vpack.c.bf16 %v1354, %v1350
        %v1644 = vpack.c.bf16 %v1362, %v1358
        %v1645 = vpack.c.bf16 %v1364, %v1360
        %v1646 = vpack.c.bf16 %v1372, %v1368
        %v1647 = vpack.c.bf16 %v1374, %v1370
        %v1648 = vpack.c.bf16 %v1382, %v1378
        %v1649 = vpack.c.bf16 %v1384, %v1380
        %v1650 = vpack.c.bf16 %v1392, %v1388
        %v1651 = vpack.c.bf16 %v1394, %v1390
        %v1652 = vpack.c.bf16 %v1402, %v1398
        %v1653 = vpack.c.bf16 %v1404, %v1400
        %v1654 = vpack.c.bf16 %v1412, %v1408
        %v1655 = vpack.c.bf16 %v1414, %v1410
        %v1672 = vunpack.c.l.b16 %v1640
        %v1673 = vunpack.c.l.b16 %v1641
        %v1674 = vunpack.c.h.b16 %v1640
        %v1675 = vunpack.c.h.b16 %v1641
        %v1676 = vunpack.c.l.b16 %v1642
        %v1677 = vunpack.c.l.b16 %v1643
        %v1678 = vunpack.c.h.b16 %v1642
        %v1679 = vunpack.c.h.b16 %v1643
        %v1680 = vunpack.c.l.b16 %v1644
        %v1681 = vunpack.c.l.b16 %v1645
        %v1682 = vunpack.c.h.b16 %v1644
        %v1683 = vunpack.c.h.b16 %v1645
        %v1684 = vunpack.c.l.b16 %v1646
        %v1685 = vunpack.c.l.b16 %v1647
        %v1686 = vunpack.c.h.b16 %v1646
        %v1687 = vunpack.c.h.b16 %v1647
        %v1688 = vunpack.c.l.b16 %v1648
        %v1689 = vunpack.c.l.b16 %v1649
        %v1690 = vunpack.c.h.b16 %v1648
        %v1691 = vunpack.c.h.b16 %v1649
        %v1692 = vunpack.c.l.b16 %v1650
        %v1693 = vunpack.c.l.b16 %v1651
        %v1694 = vunpack.c.h.b16 %v1650
        %v1695 = vunpack.c.h.b16 %v1651
        %v1696 = vunpack.c.l.b16 %v1652
        %v1697 = vunpack.c.l.b16 %v1653
        %v1698 = vunpack.c.h.b16 %v1652
        %v1699 = vunpack.c.h.b16 %v1653
        %v1700 = vunpack.c.l.b16 %v1654
        %v1701 = vunpack.c.l.b16 %v1655
        %v1702 = vunpack.c.h.b16 %v1654
        %v1703 = vunpack.c.h.b16 %v1655
        %v1704 = vpack.c.b16 %v1673, %v1672
        %v1705 = vpack.c.b16 %v1675, %v1674
        %v1706 = vpack.c.b16 %v1677, %v1676
        %v1707 = vpack.c.b16 %v1679, %v1678
        %v1708 = vpack.c.b16 %v1681, %v1680
        %v1709 = vpack.c.b16 %v1683, %v1682
        %v1710 = vpack.c.b16 %v1685, %v1684
        %v1711 = vpack.c.b16 %v1687, %v1686
        %v1712 = vpack.c.b16 %v1689, %v1688
        %v1713 = vpack.c.b16 %v1691, %v1690
        %v1714 = vpack.c.b16 %v1693, %v1692
        %v1715 = vpack.c.b16 %v1695, %v1694
        %v1716 = vpack.c.b16 %v1697, %v1696
        %v1717 = vpack.c.b16 %v1699, %v1698
        %v1718 = vpack.c.b16 %v1701, %v1700
        %v1719 = vpack.c.b16 %v1703, %v1702
        %1736 = vst [vmem:[%s378] sm:$0xff] %v1704
        %1737 = vst [vmem:[%s378 + $0x8] sm:$0xff] %v1705
        %1738 = vst [vmem:[%s378 + $0x10] sm:$0xff] %v1706
        %1739 = vst [vmem:[%s378 + $0x18] sm:$0xff] %v1707
        %1740 = vst [vmem:[%s378 + $0x20] sm:$0xff] %v1708
        %1741 = vst [vmem:[%s378 + $0x28] sm:$0xff] %v1709
        %1742 = vst [vmem:[%s378 + $0x30] sm:$0xff] %v1710
        %1743 = vst [vmem:[%s378 + $0x38] sm:$0xff] %v1711
        %1744 = vst [vmem:[%s378 + $0x40] sm:$0xff] %v1712
        %1745 = vst [vmem:[%s378 + $0x48] sm:$0xff] %v1713
        %1746 = vst [vmem:[%s378 + $0x50] sm:$0xff] %v1714
        %1747 = vst [vmem:[%s378 + $0x58] sm:$0xff] %v1715
        %1748 = vst [vmem:[%s378 + $0x60] sm:$0xff] %v1716
        %1749 = vst [vmem:[%s378 + $0x68] sm:$0xff] %v1717
        %1750 = vst [vmem:[%s378 + $0x70] sm:$0xff] %v1718
        %1751 = vst [vmem:[%s378 + $0x78] sm:$0xff] %v1719
        %s1752 = sand.u32 %s189, 1
        %s1753 = scalar_lea.sflag [#allocation4], %s1752
        %s1754 = sand.u32 %s189, 1
        %s1755 = smul.addr %s1754, 128
        %s1756 = scalar_lea.vmem [#allocation5], %s1755
        %s1757 = sand.u32 %s29, 1
        %s1758 = scalar_lea.sflag [#allocation7], %s1757
        %s1759 = sand.u32 %s217, 1
        %s1760 = smul.addr %s1759, 128
        %s1761 = scalar_lea.vmem [#allocation6], %s1760
        %s1762 = sand.u32 %s29, 1
        %s1763 = scalar_lea.sflag [#allocation7], %s1762
        %s1764 = sand.u32 %s245, 1
        %s1765 = smul.addr %s1764, 128
        %s1766 = scalar_lea.vmem [#allocation8], %s1765
        // Predicated region
        $region49: #{tpu_custom_call.1} parent=43 // pred_check
          %p1767 = pneg %p199
        $region50: #{tpu_custom_call.1} parent=43 // pred_check_branch
          %1769 = sbr.rel (%p1767) target = $region52
        $region51: #{tpu_custom_call.1} parent=43 // pred_region
          %s1770 = smul.u32 2, %s34
          %s1772 = ssub.s32 2048, 2048
          %1773 = vsyncadd %s1753, %s1772
          %s1774 = smul.addr %s33, 32
          %s1775 = sadd.s32 %s1770, %s1774
          %s1776 = smul.addr %s1775, 64
          %s1777 = scalar_lea.hbm %s6, %s1776
          %s1778 = sshll.u32 %s1756, 4
          %s1779 = int_to_ptr.vmem [resolvable:$true] %s1778
          %1784 = dma.vmem_to_hbm [thread:$0]  %s1779, 2048, %s1777, %s1753, 128, 128, 8
        $region52: #{tpu_custom_call.1} parent=43 // pred_fallthru
          _
        // Predicated region
        $region53: #{tpu_custom_call.1} parent=43 // pred_check
          %p1785 = pneg %p227
        $region54: #{tpu_custom_call.1} parent=43 // pred_check_branch
          %1787 = sbr.rel (%p1785) target = $region56
        $region55: #{tpu_custom_call.1} parent=43 // pred_region
          %s1788 = smul.u32 2, %s34
          %s1790 = ssub.s32 2048, 2048
          %1791 = vsyncadd %s1758, %s1790
          %s1792 = smul.addr %s33, 32
          %s1793 = sadd.s32 %s1788, %s1792
          %s1794 = smul.addr %s1793, 64
          %s1795 = scalar_lea.hbm %s7, %s1794
          %s1796 = sshll.u32 %s1761, 4
          %s1797 = int_to_ptr.vmem [resolvable:$true] %s1796
          %1802 = dma.vmem_to_hbm [thread:$0]  %s1797, 2048, %s1795, %s1758, 128, 128, 8
        $region56: #{tpu_custom_call.1} parent=43 // pred_fallthru
          _
        // Predicated region
        $region57: #{tpu_custom_call.1} parent=43 // pred_check
          %p1803 = pneg %p255
        $region58: #{tpu_custom_call.1} parent=43 // pred_check_branch
          %1805 = sbr.rel (%p1803) target = $region60
        $region59: #{tpu_custom_call.1} parent=43 // pred_region
          %s1806 = smul.u32 2, %s34
          %s1808 = ssub.s32 2048, 2048
          %1809 = vsyncadd %s1763, %s1808
          %s1810 = smul.addr %s33, 32
          %s1811 = sadd.s32 %s1806, %s1810
          %s1812 = smul.addr %s1811, 64
          %s1813 = scalar_lea.hbm %s8, %s1812
          %s1814 = sshll.u32 %s1766, 4
          %s1815 = int_to_ptr.vmem [resolvable:$true] %s1814
          %1820 = dma.vmem_to_hbm [thread:$0]  %s1815, 2048, %s1813, %s1763, 128, 128, 8
        $region60: #{tpu_custom_call.1} parent=43 // pred_fallthru
          _
      $region44: #{tpu_custom_call.1} parent=5 // pred_fallthru
        _
      %p1821 = scmp.le.s32.totalorder 2, %s24
      // Predicated region
      $region61: #{tpu_custom_call.1} parent=5 // pred_check
        %p1822 = pneg %p1821
      $region62: #{tpu_custom_call.1} parent=5 // pred_check_branch
        %1824 = sbr.rel (%p1822) target = $region64
      $region63: #{tpu_custom_call.1} parent=5 // pred_region
        %s1825 = ssub.s32 %s24, 2
        // Predicated region
        $region65: #{tpu_custom_call.1} parent=63 // pred_check
          %p1826 = pneg %p205
        $region66: #{tpu_custom_call.1} parent=63 // pred_check_branch
          %1828 = sbr.rel (%p1826) target = $region68
        $region67: #{tpu_custom_call.1} parent=63 // pred_region
          %s1829 = sand.u32 %s190, 1
          %s1830 = scalar_lea.sflag [#allocation4], %s1829
          %s1831 = sand.u32 %s190, 1
          %s1832 = smul.addr %s1831, 128
          %s1833 = scalar_lea.vmem [#allocation5], %s1832
          %1834 = dma.done %s1830, 2048
        $region68: #{tpu_custom_call.1} parent=63 // pred_fallthru
          _
        // Predicated region
        $region69: #{tpu_custom_call.1} parent=63 // pred_check
          %p1835 = pneg %p233
        $region70: #{tpu_custom_call.1} parent=63 // pred_check_branch
          %1837 = sbr.rel (%p1835) target = $region72
        $region71: #{tpu_custom_call.1} parent=63 // pred_region
          %s1838 = sand.u32 %s30, 1
          %s1839 = scalar_lea.sflag [#allocation7], %s1838
          %s1840 = sand.u32 %s218, 1
          %s1841 = smul.addr %s1840, 128
          %s1842 = scalar_lea.vmem [#allocation6], %s1841
          %1843 = dma.done %s1839, 2048
        $region72: #{tpu_custom_call.1} parent=63 // pred_fallthru
          _
        // Predicated region
        $region73: #{tpu_custom_call.1} parent=63 // pred_check
          %p1844 = pneg %p261
        $region74: #{tpu_custom_call.1} parent=63 // pred_check_branch
          %1846 = sbr.rel (%p1844) target = $region76
        $region75: #{tpu_custom_call.1} parent=63 // pred_region
          %s1847 = sand.u32 %s30, 1
          %s1848 = scalar_lea.sflag [#allocation7], %s1847
          %s1849 = sand.u32 %s246, 1
          %s1850 = smul.addr %s1849, 128
          %s1851 = scalar_lea.vmem [#allocation8], %s1850
          %1852 = dma.done %s1848, 2048
        $region76: #{tpu_custom_call.1} parent=63 // pred_fallthru
          _
      $region64: #{tpu_custom_call.1} parent=5 // pred_fallthru
        _
    $region6: #{tpu_custom_call.1} parent=1 // loop_footer
      %s28 = sadd.s32 1, %s24
    $region7: #{tpu_custom_call.1} parent=1 // loop_footer_branch
      %23 = sbr.rel target = $region3
    $region8: #{tpu_custom_call.1} parent=1 // loop_exit
      _
    %1853 = vsyncpa [#allocation3], 1
    %s1854 = scalar_lea.sflag [#allocation3], 1
    %1855 = vsyncpa %s1854, 1
    %1856 = vsyncpa [#allocation4], 1
    %s1857 = scalar_lea.sflag [#allocation4], 1
    %1858 = vsyncpa %s1857, 1
    %1859 = vsyncpa [#allocation7], 1
    %s1860 = scalar_lea.sflag [#allocation7], 1
    %1861 = vsyncpa %s1860, 1

</llo_original>
